<compile_context>
chip_gen: v5e
topology: v5e:2x2
jax: 0.10.0
libtpu: 0.0.40
codegen_flags: <defaults>
</compile_context>

<pallas_src>
import functools

import jax
import jax.numpy as jnp
from jax.experimental import pallas as pl
from jax.experimental.pallas import tpu as pltpu


def _msa_kernel(*refs, num_heads: int, head_dim: int, has_mask: bool):
    if has_mask:
        x_ref, wqkv_ref, bqkv_ref, wproj_ref, bproj_ref, mask_ref, o_ref = refs
    else:
        x_ref, wqkv_ref, bqkv_ref, wproj_ref, bproj_ref, o_ref = refs
        mask_ref = None

    WB, F_W, ED = x_ref.shape
    H, hd = num_heads, head_dim
    M = WB * F_W
    scale = jnp.float32(float(hd) ** -0.5)

    # Fused QKV projection for every window in the block: (M, 3*ED).
    # bf16 MXU operands, f32 accumulation.
    x2 = x_ref[...].reshape(M, ED).astype(jnp.bfloat16)
    qkv = jnp.dot(x2, wqkv_ref[...], preferred_element_type=jnp.float32)
    qkv = qkv + bqkv_ref[...]

    # torch layout of the 3*ED axis is (3, H, hd): split q/k/v only at the
    # 128-aligned boundaries; heads are obtained below via hd-wide slices of
    # these (done once per head per grid step, not per window).
    q = qkv[:, :ED].reshape(WB, F_W, ED).astype(jnp.bfloat16)
    k = qkv[:, ED:2 * ED].reshape(WB, F_W, ED).astype(jnp.bfloat16)
    v = qkv[:, 2 * ED:].reshape(WB, F_W, ED).astype(jnp.bfloat16)

    # All windows of this block share one batch element -> load the mask once.
    mask = mask_ref[0] if mask_ref is not None else None      # (H, F_W, F_W)

    y = None                                                   # (M, ED) f32
    for h in range(H):                        # static unroll over heads only
        c0 = h * hd
        qh = q[:, :, c0:c0 + hd]              # (WB, F_W, hd) bf16
        kh = k[:, :, c0:c0 + hd]
        vh = v[:, :, c0:c0 + hd]

        # scores for all windows of the block in one batched matmul.
        s = jnp.einsum('wqd,wkd->wqk', qh, kh,
                       preferred_element_type=jnp.float32) * scale
        if mask is not None:
            s = s + mask[h][None, :, :]

        # numerically-stable softmax along the key axis (f32).
        s = s - jnp.max(s, axis=-1, keepdims=True)
        p = jnp.exp(s)
        p = p * pl.reciprocal(jnp.sum(p, axis=-1, keepdims=True), approx=True)

        oh = jnp.einsum('wqk,wkd->wqd', p.astype(jnp.bfloat16), vh,
                        preferred_element_type=jnp.float32)    # (WB, F_W, hd)

        # Fuse the head re-interleave into the output projection:
        # y += out_h @ w_proj[h*hd:(h+1)*hd, :]  (sublane-aligned row slice).
        contrib = jnp.dot(oh.reshape(M, hd).astype(jnp.bfloat16),
                          wproj_ref[c0:c0 + hd, :],
                          preferred_element_type=jnp.float32)
        y = contrib if y is None else y + contrib

    y = y + bproj_ref[...]
    o_ref[...] = y.reshape(WB, F_W, ED).astype(o_ref.dtype)


def msa_forward(x, w_qkv, b_qkv, w_proj, b_proj, *, num_heads, B, nW,
                adj_mask=None, windows_per_block=None):
    """Equivalent of MSA.forward(x, B, nW, parent) with weights in (in, out) layout.

    x:        (B*nW, F_W, ED)
    w_qkv:    (ED, 3*ED), b_qkv: (3*ED,)
    w_proj:   (ED, ED),   b_proj: (ED,)
    adj_mask: optional (B, num_heads, F_W, F_W) additive mask.
    """
    B_nW, F_W, ED = x.shape
    assert B_nW == B * nW, "x.shape[0] must equal B * nW"
    assert ED % num_heads == 0, "dim and number of heads are incompatible"
    assert ED % 128 == 0, "ED must be a multiple of 128 (lane tile); pad the embedding dim"
    assert F_W % 8 == 0, "F_W must be a multiple of 8 (sublane tile); pad the window"
    hd = ED // num_heads

    if windows_per_block is None:
        # Largest divisor of nW keeping M = WB*F_W <= 1024 rows: fills the MXU
        # (>=128/256 rows when possible) while staying far below VMEM limits
        # (per-block footprint is only ~WB*F_W*~3 KiB).
        max_rows = 1024
        windows_per_block = 1
        for cand in range(1, nW + 1):
            if nW % cand == 0 and cand * F_W <= max_rows:
                windows_per_block = cand
    WB = windows_per_block
    assert nW % WB == 0, "windows_per_block must divide nW"
    nblk = nW // WB

    # MXU operands in bf16 (resident in VMEM across the grid); biases f32.
    w_qkv_b = w_qkv.astype(jnp.bfloat16)
    w_proj_b = w_proj.astype(jnp.bfloat16)
    b_qkv2 = b_qkv.reshape(1, 3 * ED).astype(jnp.float32)
    b_proj2 = b_proj.reshape(1, ED).astype(jnp.float32)

    kernel = functools.partial(_msa_kernel, num_heads=num_heads, head_dim=hd,
                               has_mask=adj_mask is not None)

    in_specs = [
        pl.BlockSpec((WB, F_W, ED), lambda b, w: (b * nblk + w, 0, 0)),
        pl.BlockSpec((ED, 3 * ED), lambda b, w: (0, 0)),
        pl.BlockSpec((1, 3 * ED), lambda b, w: (0, 0)),
        pl.BlockSpec((ED, ED), lambda b, w: (0, 0)),
        pl.BlockSpec((1, ED), lambda b, w: (0, 0)),
    ]
    operands = [x, w_qkv_b, b_qkv2, w_proj_b, b_proj2]
    if adj_mask is not None:
        in_specs.append(
            pl.BlockSpec((1, num_heads, F_W, F_W), lambda b, w: (b, 0, 0, 0)))
        operands.append(adj_mask)

    flops = B_nW * (2 * F_W * ED * 3 * ED             # qkv projection
                    + num_heads * 4 * F_W * F_W * hd  # scores + attn @ v
                    + 2 * F_W * ED * ED)              # output projection
    bytes_accessed = (sum(int(a.size) * a.dtype.itemsize for a in operands)
                      + int(x.size) * x.dtype.itemsize)
    cost = pl.CostEstimate(flops=int(flops),
                           transcendentals=int(B_nW * num_heads * F_W * F_W),
                           bytes_accessed=int(bytes_accessed))

    grid_spec = pltpu.PrefetchScalarGridSpec(
        num_scalar_prefetch=0,
        grid=(B, nblk),
        in_specs=in_specs,
        out_specs=pl.BlockSpec((WB, F_W, ED), lambda b, w: (b * nblk + w, 0, 0)),
    )

    return pl.pallas_call(
        kernel,
        out_shape=jax.ShapeDtypeStruct(x.shape, x.dtype),
        grid_spec=grid_spec,
        compiler_params=pltpu.CompilerParams(
            dimension_semantics=("parallel", "parallel")),
        cost_estimate=cost,
    )(*operands)


def msa_reference(x, w_qkv, b_qkv, w_proj, b_proj, *, num_heads, B, nW,
                  adj_mask=None):
    """Pure-JAX (f32) reference matching the PyTorch MSA.forward semantics."""
    B_nW, F_W, ED = x.shape
    hd = ED // num_heads
    qkv = x @ w_qkv + b_qkv.reshape(3 * ED)
    qkv = qkv.reshape(B_nW, F_W, 3, num_heads, hd).transpose(2, 0, 3, 1, 4)
    q, k, v = qkv[0], qkv[1], qkv[2]
    q = q * (float(hd) ** -0.5)
    attn = jnp.einsum('bhqd,bhkd->bhqk', q, k)
    if adj_mask is not None:
        attn = attn.reshape(B, nW, num_heads, F_W, F_W) + adj_mask[:, None]
        attn = attn.reshape(B_nW, num_heads, F_W, F_W)
    attn = jax.nn.softmax(attn, axis=-1)
    out = jnp.einsum('bhqk,bhkd->bhqd', attn, v)
    out = out.transpose(0, 2, 1, 3).reshape(B_nW, F_W, ED)
    return out @ w_proj + b_proj.reshape(ED)


def _check(out, ref, name):
    err = float(jnp.max(jnp.abs(out - ref)))
    ref_scale = float(jnp.max(jnp.abs(ref)))
    # bf16 MXU operands with f32 accumulation -> slightly looser than pure f32.
    tol = 5e-2 + 2e-2 * ref_scale
    assert err <= tol, f"{name} mismatch: max abs err = {err} (tol {tol})"


if __name__ == "__main__":
    key = jax.random.PRNGKey(0)
    B, nW, F_W = 2, 4, 16          # batch, windows per sample, tokens per window
    H, ED = 4, 128                 # heads, embedding dim (head_dim = 32)

    k0, k1, k2, k3, k4, k5 = jax.random.split(key, 6)
    x = jax.random.normal(k0, (B * nW, F_W, ED), jnp.float32)
    w_qkv = jax.random.normal(k1, (ED, 3 * ED), jnp.float32) * 0.05
    b_qkv = jax.random.normal(k2, (3 * ED,), jnp.float32) * 0.05
    w_proj = jax.random.normal(k3, (ED, ED), jnp.float32) * 0.05
    b_proj = jax.random.normal(k4, (ED,), jnp.float32) * 0.05
    adj_mask = 0.5 * jax.random.normal(k5, (B, H, F_W, F_W), jnp.float32)

    # masked path, default windows_per_block (whole batch element per step)
    out = msa_forward(x, w_qkv, b_qkv, w_proj, b_proj,
                      num_heads=H, B=B, nW=nW, adj_mask=adj_mask)
    jax.block_until_ready(out)
    ref = msa_reference(x, w_qkv, b_qkv, w_proj, b_proj,
                        num_heads=H, B=B, nW=nW, adj_mask=adj_mask)
    assert out.shape == x.shape and out.dtype == x.dtype
    _check(out, ref, "masked MSA")

    # mask-free path, explicit smaller block to exercise nblk > 1 index maps
    out_nm = msa_forward(x, w_qkv, b_qkv, w_proj, b_proj,
                         num_heads=H, B=B, nW=nW, adj_mask=None,
                         windows_per_block=2)
    jax.block_until_ready(out_nm)
    ref_nm = msa_reference(x, w_qkv, b_qkv, w_proj, b_proj,
                           num_heads=H, B=B, nW=nW, adj_mask=None)
    _check(out_nm, ref_nm, "mask-free MSA")

    print("KERNEL_OK")
</pallas_src>

<mosaic_0001>
module attributes {stable_mosaic.version = 11 : i64} {
  func.func @_msa_kernel(%arg0: i32, %arg1: i32, %arg2: memref<4x16x128xf32, #tpu.memory_space<vmem>>, %arg3: memref<128x384xbf16, #tpu.memory_space<vmem>>, %arg4: memref<1x384xf32, #tpu.memory_space<vmem>>, %arg5: memref<128x128xbf16, #tpu.memory_space<vmem>>, %arg6: memref<1x128xf32, #tpu.memory_space<vmem>>, %arg7: memref<1x4x16x16xf32, #tpu.memory_space<vmem>>, %arg8: memref<4x16x128xf32, #tpu.memory_space<vmem>>) attributes {dimension_semantics = [#tpu.dimension_semantics<parallel>, #tpu.dimension_semantics<parallel>], iteration_bounds = array<i64: 2, 1>, scalar_prefetch = 0 : i64, scratch_operands = 0 : i64, tpu.core_type = #tpu.core_type<tc>, window_params = [{transform_indices = @transform_0, window_bounds = array<i64: 4, 16, 128>}, {pipeline_mode = #tpu.pipeline_mode<synchronous>, transform_indices = @transform_1, window_bounds = array<i64: 128, 384>}, {pipeline_mode = #tpu.pipeline_mode<synchronous>, transform_indices = @transform_2, window_bounds = array<i64: 1, 384>}, {pipeline_mode = #tpu.pipeline_mode<synchronous>, transform_indices = @transform_3, window_bounds = array<i64: 128, 128>}, {pipeline_mode = #tpu.pipeline_mode<synchronous>, transform_indices = @transform_4, window_bounds = array<i64: 1, 128>}, {transform_indices = @transform_5, window_bounds = array<i64: 1, 4, 16, 16>}, {transform_indices = @transform_6, window_bounds = array<i64: 4, 16, 128>}]} {
    %c0 = arith.constant 0 : index
    %c0_0 = arith.constant 0 : index
    %c0_1 = arith.constant 0 : index
    %0 = vector.load %arg2[%c0, %c0_0, %c0_1] : memref<4x16x128xf32, #tpu.memory_space<vmem>>, vector<4x16x128xf32>
    %1 = vector.shape_cast %0 : vector<4x16x128xf32> to vector<64x128xf32>
    %2 = arith.truncf %1 : vector<64x128xf32> to vector<64x128xbf16>
    %c0_2 = arith.constant 0 : index
    %c0_3 = arith.constant 0 : index
    %3 = vector.load %arg3[%c0_2, %c0_3] : memref<128x384xbf16, #tpu.memory_space<vmem>>, vector<128x384xbf16>
    %cst = arith.constant dense<0.000000e+00> : vector<64x384xf32>
    %4 = tpu.matmul %2, %3, %cst {dimension_numbers = #tpu.dot_dimension_numbers<[1], [0], [0], [1], [0, 0, 1, 1], [], []>} : vector<64x128xbf16>, vector<128x384xbf16>, vector<64x384xf32> -> vector<64x384xf32>
    %c0_4 = arith.constant 0 : index
    %c0_5 = arith.constant 0 : index
    %5 = vector.load %arg4[%c0_4, %c0_5] : memref<1x384xf32, #tpu.memory_space<vmem>>, vector<1x384xf32>
    %6 = vector.broadcast %5 : vector<1x384xf32> to vector<64x384xf32>
    %7 = arith.addf %4, %6 : vector<64x384xf32>
    %8 = vector.extract_strided_slice %7 {offsets = [0, 0], sizes = [64, 128], strides = [1, 1]} : vector<64x384xf32> to vector<64x128xf32>
    %9 = vector.shape_cast %8 : vector<64x128xf32> to vector<4x16x128xf32>
    %10 = arith.truncf %9 : vector<4x16x128xf32> to vector<4x16x128xbf16>
    %11 = vector.extract_strided_slice %7 {offsets = [0, 128], sizes = [64, 128], strides = [1, 1]} : vector<64x384xf32> to vector<64x128xf32>
    %12 = vector.shape_cast %11 : vector<64x128xf32> to vector<4x16x128xf32>
    %13 = arith.truncf %12 : vector<4x16x128xf32> to vector<4x16x128xbf16>
    %14 = vector.extract_strided_slice %7 {offsets = [0, 256], sizes = [64, 128], strides = [1, 1]} : vector<64x384xf32> to vector<64x128xf32>
    %15 = vector.shape_cast %14 : vector<64x128xf32> to vector<4x16x128xf32>
    %16 = arith.truncf %15 : vector<4x16x128xf32> to vector<4x16x128xbf16>
    %c0_6 = arith.constant 0 : index
    %c0_7 = arith.constant 0 : index
    %c0_8 = arith.constant 0 : index
    %c0_9 = arith.constant 0 : index
    %17 = vector.load %arg7[%c0_6, %c0_7, %c0_8, %c0_9] : memref<1x4x16x16xf32, #tpu.memory_space<vmem>>, vector<1x4x16x16xf32>
    %18 = vector.shape_cast %17 : vector<1x4x16x16xf32> to vector<4x16x16xf32>
    %19 = vector.extract_strided_slice %10 {offsets = [0, 0, 0], sizes = [4, 16, 32], strides = [1, 1, 1]} : vector<4x16x128xbf16> to vector<4x16x32xbf16>
    %20 = vector.extract_strided_slice %13 {offsets = [0, 0, 0], sizes = [4, 16, 32], strides = [1, 1, 1]} : vector<4x16x128xbf16> to vector<4x16x32xbf16>
    %21 = vector.extract_strided_slice %16 {offsets = [0, 0, 0], sizes = [4, 16, 32], strides = [1, 1, 1]} : vector<4x16x128xbf16> to vector<4x16x32xbf16>
    "tpu.trace_start"() <{level = 10 : i32, message = "wqd,wkd->wqk"}> : () -> ()
    %cst_10 = arith.constant dense<0.000000e+00> : vector<4x16x16xf32>
    %22 = tpu.matmul %19, %20, %cst_10 {dimension_numbers = #tpu.dot_dimension_numbers<[2], [2], [1], [1], [0, 0, 0, 1, 1, 1], [0], [0]>} : vector<4x16x32xbf16>, vector<4x16x32xbf16>, vector<4x16x16xf32> -> vector<4x16x16xf32>
    "tpu.trace_stop"() : () -> ()
    %cst_11 = arith.constant 0.176776692 : f32
    %23 = vector.broadcast %cst_11 : f32 to vector<4x16x16xf32>
    %24 = arith.mulf %22, %23 : vector<4x16x16xf32>
    %25 = vector.extract_strided_slice %18 {offsets = [0, 0, 0], sizes = [1, 16, 16], strides = [1, 1, 1]} : vector<4x16x16xf32> to vector<1x16x16xf32>
    %26 = vector.shape_cast %25 : vector<1x16x16xf32> to vector<16x16xf32>
    %27 = vector.shape_cast %26 : vector<16x16xf32> to vector<1x16x16xf32>
    %28 = vector.broadcast %27 : vector<1x16x16xf32> to vector<4x16x16xf32>
    %29 = arith.addf %24, %28 : vector<4x16x16xf32>
    %cst_12 = arith.constant dense<0xFF800000> : vector<4x16xf32>
    %30 = vector.multi_reduction <maximumf>, %29, %cst_12 [2] : vector<4x16x16xf32> to vector<4x16xf32>
    %31 = vector.shape_cast %30 : vector<4x16xf32> to vector<4x16x1xf32>
    %32 = vector.broadcast %31 : vector<4x16x1xf32> to vector<4x16x16xf32>
    %33 = arith.subf %29, %32 : vector<4x16x16xf32>
    %34 = math.exp %33 : vector<4x16x16xf32>
    %cst_13 = arith.constant dense<0.000000e+00> : vector<4x16xf32>
    %35 = vector.multi_reduction <add>, %34, %cst_13 [2] : vector<4x16x16xf32> to vector<4x16xf32>
    %36 = vector.shape_cast %35 : vector<4x16xf32> to vector<4x16x1xf32>
    %37 = tpu.reciprocal %36 {approx = true} : vector<4x16x1xf32> -> vector<4x16x1xf32>
    %38 = vector.broadcast %37 : vector<4x16x1xf32> to vector<4x16x16xf32>
    %39 = arith.mulf %34, %38 : vector<4x16x16xf32>
    %40 = arith.truncf %39 : vector<4x16x16xf32> to vector<4x16x16xbf16>
    "tpu.trace_start"() <{level = 10 : i32, message = "wqk,wkd->wqd"}> : () -> ()
    %cst_14 = arith.constant dense<0.000000e+00> : vector<4x16x32xf32>
    %41 = tpu.matmul %40, %21, %cst_14 {dimension_numbers = #tpu.dot_dimension_numbers<[2], [1], [1], [2], [0, 0, 0, 1, 1, 2], [0], [0]>} : vector<4x16x16xbf16>, vector<4x16x32xbf16>, vector<4x16x32xf32> -> vector<4x16x32xf32>
    "tpu.trace_stop"() : () -> ()
    %42 = vector.shape_cast %41 : vector<4x16x32xf32> to vector<64x32xf32>
    %43 = arith.truncf %42 : vector<64x32xf32> to vector<64x32xbf16>
    %c0_15 = arith.constant 0 : index
    %c0_16 = arith.constant 0 : index
    %44 = vector.load %arg5[%c0_15, %c0_16] : memref<128x128xbf16, #tpu.memory_space<vmem>>, vector<32x128xbf16>
    %cst_17 = arith.constant dense<0.000000e+00> : vector<64x128xf32>
    %45 = tpu.matmul %43, %44, %cst_17 {dimension_numbers = #tpu.dot_dimension_numbers<[1], [0], [0], [1], [0, 0, 1, 1], [], []>} : vector<64x32xbf16>, vector<32x128xbf16>, vector<64x128xf32> -> vector<64x128xf32>
    %46 = vector.extract_strided_slice %10 {offsets = [0, 0, 32], sizes = [4, 16, 32], strides = [1, 1, 1]} : vector<4x16x128xbf16> to vector<4x16x32xbf16>
    %47 = vector.extract_strided_slice %13 {offsets = [0, 0, 32], sizes = [4, 16, 32], strides = [1, 1, 1]} : vector<4x16x128xbf16> to vector<4x16x32xbf16>
    %48 = vector.extract_strided_slice %16 {offsets = [0, 0, 32], sizes = [4, 16, 32], strides = [1, 1, 1]} : vector<4x16x128xbf16> to vector<4x16x32xbf16>
    "tpu.trace_start"() <{level = 10 : i32, message = "wqd,wkd->wqk"}> : () -> ()
    %cst_18 = arith.constant dense<0.000000e+00> : vector<4x16x16xf32>
    %49 = tpu.matmul %46, %47, %cst_18 {dimension_numbers = #tpu.dot_dimension_numbers<[2], [2], [1], [1], [0, 0, 0, 1, 1, 1], [0], [0]>} : vector<4x16x32xbf16>, vector<4x16x32xbf16>, vector<4x16x16xf32> -> vector<4x16x16xf32>
    "tpu.trace_stop"() : () -> ()
    %cst_19 = arith.constant 0.176776692 : f32
    %50 = vector.broadcast %cst_19 : f32 to vector<4x16x16xf32>
    %51 = arith.mulf %49, %50 : vector<4x16x16xf32>
    %52 = vector.extract_strided_slice %18 {offsets = [1, 0, 0], sizes = [1, 16, 16], strides = [1, 1, 1]} : vector<4x16x16xf32> to vector<1x16x16xf32>
    %53 = vector.shape_cast %52 : vector<1x16x16xf32> to vector<16x16xf32>
    %54 = vector.shape_cast %53 : vector<16x16xf32> to vector<1x16x16xf32>
    %55 = vector.broadcast %54 : vector<1x16x16xf32> to vector<4x16x16xf32>
    %56 = arith.addf %51, %55 : vector<4x16x16xf32>
    %cst_20 = arith.constant dense<0xFF800000> : vector<4x16xf32>
    %57 = vector.multi_reduction <maximumf>, %56, %cst_20 [2] : vector<4x16x16xf32> to vector<4x16xf32>
    %58 = vector.shape_cast %57 : vector<4x16xf32> to vector<4x16x1xf32>
    %59 = vector.broadcast %58 : vector<4x16x1xf32> to vector<4x16x16xf32>
    %60 = arith.subf %56, %59 : vector<4x16x16xf32>
    %61 = math.exp %60 : vector<4x16x16xf32>
    %cst_21 = arith.constant dense<0.000000e+00> : vector<4x16xf32>
    %62 = vector.multi_reduction <add>, %61, %cst_21 [2] : vector<4x16x16xf32> to vector<4x16xf32>
    %63 = vector.shape_cast %62 : vector<4x16xf32> to vector<4x16x1xf32>
    %64 = tpu.reciprocal %63 {approx = true} : vector<4x16x1xf32> -> vector<4x16x1xf32>
    %65 = vector.broadcast %64 : vector<4x16x1xf32> to vector<4x16x16xf32>
    %66 = arith.mulf %61, %65 : vector<4x16x16xf32>
    %67 = arith.truncf %66 : vector<4x16x16xf32> to vector<4x16x16xbf16>
    "tpu.trace_start"() <{level = 10 : i32, message = "wqk,wkd->wqd"}> : () -> ()
    %cst_22 = arith.constant dense<0.000000e+00> : vector<4x16x32xf32>
    %68 = tpu.matmul %67, %48, %cst_22 {dimension_numbers = #tpu.dot_dimension_numbers<[2], [1], [1], [2], [0, 0, 0, 1, 1, 2], [0], [0]>} : vector<4x16x16xbf16>, vector<4x16x32xbf16>, vector<4x16x32xf32> -> vector<4x16x32xf32>
    "tpu.trace_stop"() : () -> ()
    %69 = vector.shape_cast %68 : vector<4x16x32xf32> to vector<64x32xf32>
    %70 = arith.truncf %69 : vector<64x32xf32> to vector<64x32xbf16>
    %c32 = arith.constant 32 : index
    %c0_23 = arith.constant 0 : index
    %71 = vector.load %arg5[%c32, %c0_23] : memref<128x128xbf16, #tpu.memory_space<vmem>>, vector<32x128xbf16>
    %cst_24 = arith.constant dense<0.000000e+00> : vector<64x128xf32>
    %72 = tpu.matmul %70, %71, %cst_24 {dimension_numbers = #tpu.dot_dimension_numbers<[1], [0], [0], [1], [0, 0, 1, 1], [], []>} : vector<64x32xbf16>, vector<32x128xbf16>, vector<64x128xf32> -> vector<64x128xf32>
    %73 = arith.addf %45, %72 : vector<64x128xf32>
    %74 = vector.extract_strided_slice %10 {offsets = [0, 0, 64], sizes = [4, 16, 32], strides = [1, 1, 1]} : vector<4x16x128xbf16> to vector<4x16x32xbf16>
    %75 = vector.extract_strided_slice %13 {offsets = [0, 0, 64], sizes = [4, 16, 32], strides = [1, 1, 1]} : vector<4x16x128xbf16> to vector<4x16x32xbf16>
    %76 = vector.extract_strided_slice %16 {offsets = [0, 0, 64], sizes = [4, 16, 32], strides = [1, 1, 1]} : vector<4x16x128xbf16> to vector<4x16x32xbf16>
    "tpu.trace_start"() <{level = 10 : i32, message = "wqd,wkd->wqk"}> : () -> ()
    %cst_25 = arith.constant dense<0.000000e+00> : vector<4x16x16xf32>
    %77 = tpu.matmul %74, %75, %cst_25 {dimension_numbers = #tpu.dot_dimension_numbers<[2], [2], [1], [1], [0, 0, 0, 1, 1, 1], [0], [0]>} : vector<4x16x32xbf16>, vector<4x16x32xbf16>, vector<4x16x16xf32> -> vector<4x16x16xf32>
    "tpu.trace_stop"() : () -> ()
    %cst_26 = arith.constant 0.176776692 : f32
    %78 = vector.broadcast %cst_26 : f32 to vector<4x16x16xf32>
    %79 = arith.mulf %77, %78 : vector<4x16x16xf32>
    %80 = vector.extract_strided_slice %18 {offsets = [2, 0, 0], sizes = [1, 16, 16], strides = [1, 1, 1]} : vector<4x16x16xf32> to vector<1x16x16xf32>
    %81 = vector.shape_cast %80 : vector<1x16x16xf32> to vector<16x16xf32>
    %82 = vector.shape_cast %81 : vector<16x16xf32> to vector<1x16x16xf32>
    %83 = vector.broadcast %82 : vector<1x16x16xf32> to vector<4x16x16xf32>
    %84 = arith.addf %79, %83 : vector<4x16x16xf32>
    %cst_27 = arith.constant dense<0xFF800000> : vector<4x16xf32>
    %85 = vector.multi_reduction <maximumf>, %84, %cst_27 [2] : vector<4x16x16xf32> to vector<4x16xf32>
    %86 = vector.shape_cast %85 : vector<4x16xf32> to vector<4x16x1xf32>
    %87 = vector.broadcast %86 : vector<4x16x1xf32> to vector<4x16x16xf32>
    %88 = arith.subf %84, %87 : vector<4x16x16xf32>
    %89 = math.exp %88 : vector<4x16x16xf32>
    %cst_28 = arith.constant dense<0.000000e+00> : vector<4x16xf32>
    %90 = vector.multi_reduction <add>, %89, %cst_28 [2] : vector<4x16x16xf32> to vector<4x16xf32>
    %91 = vector.shape_cast %90 : vector<4x16xf32> to vector<4x16x1xf32>
    %92 = tpu.reciprocal %91 {approx = true} : vector<4x16x1xf32> -> vector<4x16x1xf32>
    %93 = vector.broadcast %92 : vector<4x16x1xf32> to vector<4x16x16xf32>
    %94 = arith.mulf %89, %93 : vector<4x16x16xf32>
    %95 = arith.truncf %94 : vector<4x16x16xf32> to vector<4x16x16xbf16>
    "tpu.trace_start"() <{level = 10 : i32, message = "wqk,wkd->wqd"}> : () -> ()
    %cst_29 = arith.constant dense<0.000000e+00> : vector<4x16x32xf32>
    %96 = tpu.matmul %95, %76, %cst_29 {dimension_numbers = #tpu.dot_dimension_numbers<[2], [1], [1], [2], [0, 0, 0, 1, 1, 2], [0], [0]>} : vector<4x16x16xbf16>, vector<4x16x32xbf16>, vector<4x16x32xf32> -> vector<4x16x32xf32>
    "tpu.trace_stop"() : () -> ()
    %97 = vector.shape_cast %96 : vector<4x16x32xf32> to vector<64x32xf32>
    %98 = arith.truncf %97 : vector<64x32xf32> to vector<64x32xbf16>
    %c64 = arith.constant 64 : index
    %c0_30 = arith.constant 0 : index
    %99 = vector.load %arg5[%c64, %c0_30] : memref<128x128xbf16, #tpu.memory_space<vmem>>, vector<32x128xbf16>
    %cst_31 = arith.constant dense<0.000000e+00> : vector<64x128xf32>
    %100 = tpu.matmul %98, %99, %cst_31 {dimension_numbers = #tpu.dot_dimension_numbers<[1], [0], [0], [1], [0, 0, 1, 1], [], []>} : vector<64x32xbf16>, vector<32x128xbf16>, vector<64x128xf32> -> vector<64x128xf32>
    %101 = arith.addf %73, %100 : vector<64x128xf32>
    %102 = vector.extract_strided_slice %10 {offsets = [0, 0, 96], sizes = [4, 16, 32], strides = [1, 1, 1]} : vector<4x16x128xbf16> to vector<4x16x32xbf16>
    %103 = vector.extract_strided_slice %13 {offsets = [0, 0, 96], sizes = [4, 16, 32], strides = [1, 1, 1]} : vector<4x16x128xbf16> to vector<4x16x32xbf16>
    %104 = vector.extract_strided_slice %16 {offsets = [0, 0, 96], sizes = [4, 16, 32], strides = [1, 1, 1]} : vector<4x16x128xbf16> to vector<4x16x32xbf16>
    "tpu.trace_start"() <{level = 10 : i32, message = "wqd,wkd->wqk"}> : () -> ()
    %cst_32 = arith.constant dense<0.000000e+00> : vector<4x16x16xf32>
    %105 = tpu.matmul %102, %103, %cst_32 {dimension_numbers = #tpu.dot_dimension_numbers<[2], [2], [1], [1], [0, 0, 0, 1, 1, 1], [0], [0]>} : vector<4x16x32xbf16>, vector<4x16x32xbf16>, vector<4x16x16xf32> -> vector<4x16x16xf32>
    "tpu.trace_stop"() : () -> ()
    %cst_33 = arith.constant 0.176776692 : f32
    %106 = vector.broadcast %cst_33 : f32 to vector<4x16x16xf32>
    %107 = arith.mulf %105, %106 : vector<4x16x16xf32>
    %108 = vector.extract_strided_slice %18 {offsets = [3, 0, 0], sizes = [1, 16, 16], strides = [1, 1, 1]} : vector<4x16x16xf32> to vector<1x16x16xf32>
    %109 = vector.shape_cast %108 : vector<1x16x16xf32> to vector<16x16xf32>
    %110 = vector.shape_cast %109 : vector<16x16xf32> to vector<1x16x16xf32>
    %111 = vector.broadcast %110 : vector<1x16x16xf32> to vector<4x16x16xf32>
    %112 = arith.addf %107, %111 : vector<4x16x16xf32>
    %cst_34 = arith.constant dense<0xFF800000> : vector<4x16xf32>
    %113 = vector.multi_reduction <maximumf>, %112, %cst_34 [2] : vector<4x16x16xf32> to vector<4x16xf32>
    %114 = vector.shape_cast %113 : vector<4x16xf32> to vector<4x16x1xf32>
    %115 = vector.broadcast %114 : vector<4x16x1xf32> to vector<4x16x16xf32>
    %116 = arith.subf %112, %115 : vector<4x16x16xf32>
    %117 = math.exp %116 : vector<4x16x16xf32>
    %cst_35 = arith.constant dense<0.000000e+00> : vector<4x16xf32>
    %118 = vector.multi_reduction <add>, %117, %cst_35 [2] : vector<4x16x16xf32> to vector<4x16xf32>
    %119 = vector.shape_cast %118 : vector<4x16xf32> to vector<4x16x1xf32>
    %120 = tpu.reciprocal %119 {approx = true} : vector<4x16x1xf32> -> vector<4x16x1xf32>
    %121 = vector.broadcast %120 : vector<4x16x1xf32> to vector<4x16x16xf32>
    %122 = arith.mulf %117, %121 : vector<4x16x16xf32>
    %123 = arith.truncf %122 : vector<4x16x16xf32> to vector<4x16x16xbf16>
    "tpu.trace_start"() <{level = 10 : i32, message = "wqk,wkd->wqd"}> : () -> ()
    %cst_36 = arith.constant dense<0.000000e+00> : vector<4x16x32xf32>
    %124 = tpu.matmul %123, %104, %cst_36 {dimension_numbers = #tpu.dot_dimension_numbers<[2], [1], [1], [2], [0, 0, 0, 1, 1, 2], [0], [0]>} : vector<4x16x16xbf16>, vector<4x16x32xbf16>, vector<4x16x32xf32> -> vector<4x16x32xf32>
    "tpu.trace_stop"() : () -> ()
    %125 = vector.shape_cast %124 : vector<4x16x32xf32> to vector<64x32xf32>
    %126 = arith.truncf %125 : vector<64x32xf32> to vector<64x32xbf16>
    %c96 = arith.constant 96 : index
    %c0_37 = arith.constant 0 : index
    %127 = vector.load %arg5[%c96, %c0_37] : memref<128x128xbf16, #tpu.memory_space<vmem>>, vector<32x128xbf16>
    %cst_38 = arith.constant dense<0.000000e+00> : vector<64x128xf32>
    %128 = tpu.matmul %126, %127, %cst_38 {dimension_numbers = #tpu.dot_dimension_numbers<[1], [0], [0], [1], [0, 0, 1, 1], [], []>} : vector<64x32xbf16>, vector<32x128xbf16>, vector<64x128xf32> -> vector<64x128xf32>
    %129 = arith.addf %101, %128 : vector<64x128xf32>
    %c0_39 = arith.constant 0 : index
    %c0_40 = arith.constant 0 : index
    %130 = vector.load %arg6[%c0_39, %c0_40] : memref<1x128xf32, #tpu.memory_space<vmem>>, vector<1x128xf32>
    %131 = vector.broadcast %130 : vector<1x128xf32> to vector<64x128xf32>
    %132 = arith.addf %129, %131 : vector<64x128xf32>
    %133 = vector.shape_cast %132 : vector<64x128xf32> to vector<4x16x128xf32>
    %c0_41 = arith.constant 0 : index
    %c0_42 = arith.constant 0 : index
    %c0_43 = arith.constant 0 : index
    %134 = vector.load %arg8[%c0_41, %c0_42, %c0_43] : memref<4x16x128xf32, #tpu.memory_space<vmem>>, vector<4x16x128xf32>
    tpu.vector_store %arg8[%c0_41, %c0_42, %c0_43], %133 {strides = array<i32>} : memref<4x16x128xf32, #tpu.memory_space<vmem>>, vector<4x16x128xf32>,
    return
  }
  func.func @transform_0(%arg0: i32, %arg1: i32) -> (i32, i32, i32) {
    %c1_i32 = arith.constant 1 : i32
    %0 = arith.muli %arg0, %c1_i32 : i32
    %1 = arith.addi %0, %arg1 : i32
    %c0_i32 = arith.constant 0 : i32
    %c0_i32_0 = arith.constant 0 : i32
    %c0_i32_1 = arith.constant 0 : i32
    return %1, %c0_i32, %c0_i32_0 : i32, i32, i32
  }
  func.func @transform_1(%arg0: i32, %arg1: i32) -> (i32, i32) {
    %c0_i32 = arith.constant 0 : i32
    %c0_i32_0 = arith.constant 0 : i32
    %c0_i32_1 = arith.constant 0 : i32
    return %c0_i32, %c0_i32_0 : i32, i32
  }
  func.func @transform_2(%arg0: i32, %arg1: i32) -> (i32, i32) {
    %c0_i32 = arith.constant 0 : i32
    %c0_i32_0 = arith.constant 0 : i32
    %c0_i32_1 = arith.constant 0 : i32
    return %c0_i32, %c0_i32_0 : i32, i32
  }
  func.func @transform_3(%arg0: i32, %arg1: i32) -> (i32, i32) {
    %c0_i32 = arith.constant 0 : i32
    %c0_i32_0 = arith.constant 0 : i32
    %c0_i32_1 = arith.constant 0 : i32
    return %c0_i32, %c0_i32_0 : i32, i32
  }
  func.func @transform_4(%arg0: i32, %arg1: i32) -> (i32, i32) {
    %c0_i32 = arith.constant 0 : i32
    %c0_i32_0 = arith.constant 0 : i32
    %c0_i32_1 = arith.constant 0 : i32
    return %c0_i32, %c0_i32_0 : i32, i32
  }
  func.func @transform_5(%arg0: i32, %arg1: i32) -> (i32, i32, i32, i32) {
    %c0_i32 = arith.constant 0 : i32
    %c0_i32_0 = arith.constant 0 : i32
    %c0_i32_1 = arith.constant 0 : i32
    %c0_i32_2 = arith.constant 0 : i32
    return %arg0, %c0_i32, %c0_i32_0, %c0_i32_1 : i32, i32, i32, i32
  }
  func.func @transform_6(%arg0: i32, %arg1: i32) -> (i32, i32, i32) {
    %c1_i32 = arith.constant 1 : i32
    %0 = arith.muli %arg0, %c1_i32 : i32
    %1 = arith.addi %0, %arg1 : i32
    %c0_i32 = arith.constant 0 : i32
    %c0_i32_0 = arith.constant 0 : i32
    %c0_i32_1 = arith.constant 0 : i32
    return %1, %c0_i32, %c0_i32_0 : i32, i32, i32
  }
}

</mosaic_0001>

<llo_original>
// kernel: tpu_custom_call.1
$region0: #{tpu_custom_call.1}
  #allocation0 [shape = 'u32[]', space=smem, size = 0x4, offset = 0x4, fixed_abs, tag = 'smem constant byte address 0x4 - core index']
  #allocation1 [shape = 'u32[72,128]{1,0:T(1,128)}', space=vmem, size = 0x9000, scoped, tag = 'internal scratch']
  %s0 = inlined_call_operand.hbm [shape: f32[8,16,128], index: 0, kind: input, shape index: {}]
  %s1 = inlined_call_operand.hbm [shape: bf16[128,384], index: 1, kind: input, shape index: {}]
  %s2 = inlined_call_operand.hbm [shape: f32[1,384], index: 2, kind: input, shape index: {}]
  %s3 = inlined_call_operand.hbm [shape: bf16[128,128], index: 3, kind: input, shape index: {}]
  %s4 = inlined_call_operand.vmem [shape: f32[1,128], index: 4, kind: input, shape index: {}]
  %s5 = inlined_call_operand.hbm [shape: f32[2,4,16,16], index: 5, kind: input, shape index: {}]
  %s6 = inlined_call_operand.hbm [shape: f32[8,16,128], index: 6, kind: output, shape index: {}]
  %s7 = sld [smem:[#allocation0]]
  $region77: #{tpu_custom_call.1} parent=0
    _
  %s9 = ssub.s32 1, %s7
  %s10 = scalar_select 0, %s9, %s7
  $region1: #{tpu_custom_call.1} parent=0
    #allocation2 [shape = 'u8[65536]{0}', space=vmem, size = 0x10000, scoped, tag = 'input window, operand 0']
    #allocation3 [shape = 's32[2]{0}', space=sflag, size = 0x8, scoped, tag = 'scoped memory for tpu_custom_call.1']
    #allocation4 [shape = 's32[2]{0}', space=sflag, size = 0x8, scoped, tag = 'scoped memory for tpu_custom_call.1']
    #allocation5 [shape = 'u8[98304]{0}', space=vmem, size = 0x18000, scoped, tag = 'input window, operand 1, single buffered']
    #allocation6 [shape = 's32[1]{0}', space=sflag, size = 0x4, scoped, tag = 'scoped memory for tpu_custom_call.1']
    #allocation7 [shape = 'u8[1536]{0}', space=vmem, size = 0x800, scoped, tag = 'input window, operand 2, single buffered']
    #allocation8 [shape = 'u8[32768]{0}', space=vmem, size = 0x8000, scoped, tag = 'input window, operand 3, single buffered']
    #allocation9 [shape = 's32[1]{0}', space=sflag, size = 0x4, scoped, tag = 'scoped memory for tpu_custom_call.1']
    #allocation10 [shape = 'u8[65536]{0}', space=vmem, size = 0x10000, scoped, tag = 'input window, operand 5']
    #allocation11 [shape = 'u8[65536]{0}', space=vmem, size = 0x10000, scoped, tag = 'output window, operand 0']
    %11 = vsyncpa [#allocation3], 0
    %s12 = scalar_lea.sflag [#allocation3], 1
    %13 = vsyncpa %s12, 0
    %14 = vsyncpa [#allocation6], 0
    %15 = vsyncpa [#allocation9], 0
    %16 = vsyncpa [#allocation4], 0
    %s17 = scalar_lea.sflag [#allocation4], 1
    %18 = vsyncpa %s17, 0
    loop: start=0, step=1, limit=4
    $region2: #{tpu_custom_call.1} parent=1 // loop_pre_header
      _
    $region3: #{tpu_custom_call.1} parent=1 // loop_header
      %s20 = sphi 0, %s24
      %p21 = scmp.ge.s32.totalorder %s20, 4
      %s27 = sphi 0, %s39
      %s28 = sphi 0, %s35
      %s29 = sphi 0, %s27
      %s30 = sphi 0, %s28
      %s31 = sphi 0, %s29
      %s32 = sphi 0, %s30
      %s44 = sphi 0, %s46
      %s47 = sphi 0, %s44
      %s48 = sphi 0, %s47
      %s64 = sphi 0, %s48
      %s68 = sphi 0, %s68
      %s70 = sphi 0, %s68
      %s71 = sphi 0, %s70
      %s85 = sphi 0, %s71
      %s89 = sphi 0, %s89
      %s91 = sphi 0, %s89
      %s92 = sphi 0, %s91
      %s106 = sphi 0, %s92
      %s110 = sphi 0, %s110
      %s112 = sphi 0, %s110
      %s113 = sphi 0, %s112
      %s127 = sphi 0, %s113
      %s131 = sphi 0, %s131
      %s133 = sphi 0, %s131
      %s134 = sphi 0, %s133
      %s148 = sphi 0, %s134
      %s154 = sphi 0, %s156
      %s157 = sphi 0, %s154
      %s158 = sphi 0, %s157
      %s174 = sphi 0, %s158
      %s182 = sphi 0, %s184
      %s185 = sphi 0, %s182
      %s186 = sphi 0, %s185
      %s202 = sphi 0, %s186
    $region4: #{tpu_custom_call.1} parent=1 // loop_header_branch
      %23 = sbr.rel (%p21) target = $region8
    $region5: #{tpu_custom_call.1} parent=1 // loop_body
      %s25 = ssub.s32 %s20, 1
      %s26 = ssub.s32 %s20, 2
      %s33 = sadd.s32 1, %s28
      %p34 = scmp.ge.s32.totalorder %s33, 1
      %s35 = scalar_select %p34, 0, %s33
      %s36 = sadd.s32 1, %s27
      %s37 = scalar_select %p34, %s36, %s27
      %p38 = scmp.ge.s32.totalorder %s37, 2
      %s39 = scalar_select %p38, 0, %s37
      %s40 = sadd.s32 %s27, %s28
      %s41 = sadd.s32 %s39, %s35
      %s42 = ssub.s32 %s40, %s41
      %p43 = scmp.eq.s32.totalorder %s42, 0
      %s45 = sadd.s32 %s44, 1
      %s46 = scalar_select %p43, %s44, %s45
      %p49 = pneg %p43
      %p50 = scmp.eq.s32.totalorder %s20, 1
      %p51 = por %p49, %p50
      %p52 = scmp.ne.s32.totalorder %s44, %s47
      %p53 = scmp.eq.s32.totalorder %s20, 0
      %p54 = por %p52, %p53
      %p55 = scmp.ne.s32.totalorder %s44, %s47
      %p56 = scmp.eq.s32.totalorder %s25, 1
      %p57 = por %p55, %p56
      %p58 = scmp.ne.s32.totalorder %s47, %s48
      %p59 = scmp.eq.s32.totalorder %s25, 0
      %p60 = por %p58, %p59
      %p61 = scmp.ne.s32.totalorder %s47, %s48
      %p62 = scmp.eq.s32.totalorder %s26, 1
      %p63 = por %p61, %p62
      %p65 = scmp.ne.s32.totalorder %s48, %s64
      %p66 = scmp.eq.s32.totalorder %s26, 0
      %p67 = por %p65, %p66
      %s69 = sadd.s32 %s68, 1
      %p72 = scmp.eq.s32.totalorder %s20, 1
      %p73 = scmp.ne.s32.totalorder %s68, %s70
      %p74 = scmp.eq.s32.totalorder %s20, 0
      %p75 = por %p73, %p74
      %p76 = scmp.ne.s32.totalorder %s68, %s70
      %p77 = scmp.eq.s32.totalorder %s25, 1
      %p78 = por %p76, %p77
      %p79 = scmp.ne.s32.totalorder %s70, %s71
      %p80 = scmp.eq.s32.totalorder %s25, 0
      %p81 = por %p79, %p80
      %p82 = scmp.ne.s32.totalorder %s70, %s71
      %p83 = scmp.eq.s32.totalorder %s26, 1
      %p84 = por %p82, %p83
      %p86 = scmp.ne.s32.totalorder %s71, %s85
      %p87 = scmp.eq.s32.totalorder %s26, 0
      %p88 = por %p86, %p87
      %s90 = sadd.s32 %s89, 1
      %p93 = scmp.eq.s32.totalorder %s20, 1
      %p94 = scmp.ne.s32.totalorder %s89, %s91
      %p95 = scmp.eq.s32.totalorder %s20, 0
      %p96 = por %p94, %p95
      %p97 = scmp.ne.s32.totalorder %s89, %s91
      %p98 = scmp.eq.s32.totalorder %s25, 1
      %p99 = por %p97, %p98
      %p100 = scmp.ne.s32.totalorder %s91, %s92
      %p101 = scmp.eq.s32.totalorder %s25, 0
      %p102 = por %p100, %p101
      %p103 = scmp.ne.s32.totalorder %s91, %s92
      %p104 = scmp.eq.s32.totalorder %s26, 1
      %p105 = por %p103, %p104
      %p107 = scmp.ne.s32.totalorder %s92, %s106
      %p108 = scmp.eq.s32.totalorder %s26, 0
      %p109 = por %p107, %p108
      %s111 = sadd.s32 %s110, 1
      %p114 = scmp.eq.s32.totalorder %s20, 1
      %p115 = scmp.ne.s32.totalorder %s110, %s112
      %p116 = scmp.eq.s32.totalorder %s20, 0
      %p117 = por %p115, %p116
      %p118 = scmp.ne.s32.totalorder %s110, %s112
      %p119 = scmp.eq.s32.totalorder %s25, 1
      %p120 = por %p118, %p119
      %p121 = scmp.ne.s32.totalorder %s112, %s113
      %p122 = scmp.eq.s32.totalorder %s25, 0
      %p123 = por %p121, %p122
      %p124 = scmp.ne.s32.totalorder %s112, %s113
      %p125 = scmp.eq.s32.totalorder %s26, 1
      %p126 = por %p124, %p125
      %p128 = scmp.ne.s32.totalorder %s113, %s127
      %p129 = scmp.eq.s32.totalorder %s26, 0
      %p130 = por %p128, %p129
      %s132 = sadd.s32 %s131, 1
      %p135 = scmp.eq.s32.totalorder %s20, 1
      %p136 = scmp.ne.s32.totalorder %s131, %s133
      %p137 = scmp.eq.s32.totalorder %s20, 0
      %p138 = por %p136, %p137
      %p139 = scmp.ne.s32.totalorder %s131, %s133
      %p140 = scmp.eq.s32.totalorder %s25, 1
      %p141 = por %p139, %p140
      %p142 = scmp.ne.s32.totalorder %s133, %s134
      %p143 = scmp.eq.s32.totalorder %s25, 0
      %p144 = por %p142, %p143
      %p145 = scmp.ne.s32.totalorder %s133, %s134
      %p146 = scmp.eq.s32.totalorder %s26, 1
      %p147 = por %p145, %p146
      %p149 = scmp.ne.s32.totalorder %s134, %s148
      %p150 = scmp.eq.s32.totalorder %s26, 0
      %p151 = por %p149, %p150
      %s152 = ssub.s32 %s27, %s39
      %p153 = scmp.eq.s32.totalorder %s152, 0
      %s155 = sadd.s32 %s154, 1
      %s156 = scalar_select %p153, %s154, %s155
      %p159 = pneg %p153
      %p160 = scmp.eq.s32.totalorder %s20, 1
      %p161 = por %p159, %p160
      %p162 = scmp.ne.s32.totalorder %s154, %s157
      %p163 = scmp.eq.s32.totalorder %s20, 0
      %p164 = por %p162, %p163
      %p165 = scmp.ne.s32.totalorder %s154, %s157
      %p166 = scmp.eq.s32.totalorder %s25, 1
      %p167 = por %p165, %p166
      %p168 = scmp.ne.s32.totalorder %s157, %s158
      %p169 = scmp.eq.s32.totalorder %s25, 0
      %p170 = por %p168, %p169
      %p171 = scmp.ne.s32.totalorder %s157, %s158
      %p172 = scmp.eq.s32.totalorder %s26, 1
      %p173 = por %p171, %p172
      %p175 = scmp.ne.s32.totalorder %s158, %s174
      %p176 = scmp.eq.s32.totalorder %s26, 0
      %p177 = por %p175, %p176
      %s178 = sadd.s32 %s27, %s28
      %s179 = sadd.s32 %s39, %s35
      %s180 = ssub.s32 %s178, %s179
      %p181 = scmp.eq.s32.totalorder %s180, 0
      %s183 = sadd.s32 %s182, 1
      %s184 = scalar_select %p181, %s182, %s183
      %p187 = pneg %p181
      %p188 = scmp.eq.s32.totalorder %s20, 1
      %p189 = por %p187, %p188
      %p190 = scmp.ne.s32.totalorder %s182, %s185
      %p191 = scmp.eq.s32.totalorder %s20, 0
      %p192 = por %p190, %p191
      %p193 = scmp.ne.s32.totalorder %s182, %s185
      %p194 = scmp.eq.s32.totalorder %s25, 1
      %p195 = por %p193, %p194
      %p196 = scmp.ne.s32.totalorder %s185, %s186
      %p197 = scmp.eq.s32.totalorder %s25, 0
      %p198 = por %p196, %p197
      %p199 = scmp.ne.s32.totalorder %s185, %s186
      %p200 = scmp.eq.s32.totalorder %s26, 1
      %p201 = por %p199, %p200
      %p203 = scmp.ne.s32.totalorder %s186, %s202
      %p204 = scmp.eq.s32.totalorder %s26, 0
      %p205 = por %p203, %p204
      %p206 = scmp.le.s32.totalorder 1, %s20
      %p207 = scmp.lt.s32.totalorder %s20, 3
      %p208 = pnand %p206, %p207
      %p209 = pneg %p208
      // Predicated region
      $region9: #{tpu_custom_call.1} parent=5 // pred_check
        _
      $region10: #{tpu_custom_call.1} parent=5 // pred_check_branch
        %211 = sbr.rel (%p208) target = $region12
      $region11: #{tpu_custom_call.1} parent=5 // pred_region
        %s212 = ssub.s32 %s20, 1
        // Predicated region
        $region13: #{tpu_custom_call.1} parent=11 // pred_check
          %p213 = pneg %p81
        $region14: #{tpu_custom_call.1} parent=11 // pred_check_branch
          %215 = sbr.rel (%p213) target = $region16
        $region15: #{tpu_custom_call.1} parent=11 // pred_region
          %217 = vsyncadd [#allocation6], 0
          %s218 = sshll.u32 %s1, 4
          %s219 = int_to_ptr.hbm [resolvable:$true] %s218
          %s220 = sshll.u32 [#allocation5], 4
          %s221 = int_to_ptr.vmem [resolvable:$true] %s220
          %226 = dma.hbm_to_vmem [thread:$0]  %s219, 3072, %s221, [#allocation6], 192, 192, 12
        $region16: #{tpu_custom_call.1} parent=11 // pred_fallthru
          _
        // Predicated region
        $region17: #{tpu_custom_call.1} parent=11 // pred_check
          %p227 = pneg %p102
        $region18: #{tpu_custom_call.1} parent=11 // pred_check_branch
          %229 = sbr.rel (%p227) target = $region20
        $region19: #{tpu_custom_call.1} parent=11 // pred_region
          %231 = vsyncadd [#allocation6], 0
          %s233 = sshll.u32 %s2, 4
          %s234 = int_to_ptr.hbm [resolvable:$true] %s233
          %s235 = sshll.u32 [#allocation7], 4
          %s236 = int_to_ptr.vmem [resolvable:$true] %s235
          %238 = dma.hbm_to_vmem [thread:$0]  %s234, 48, %s236, [#allocation6]
        $region20: #{tpu_custom_call.1} parent=11 // pred_fallthru
          _
        // Predicated region
        $region21: #{tpu_custom_call.1} parent=11 // pred_check
          %p239 = pneg %p123
        $region22: #{tpu_custom_call.1} parent=11 // pred_check_branch
          %241 = sbr.rel (%p239) target = $region24
        $region23: #{tpu_custom_call.1} parent=11 // pred_region
          %243 = vsyncadd [#allocation9], 0
          %s244 = sshll.u32 %s3, 4
          %s245 = int_to_ptr.hbm [resolvable:$true] %s244
          %s246 = sshll.u32 [#allocation8], 4
          %s247 = int_to_ptr.vmem [resolvable:$true] %s246
          %252 = dma.hbm_to_vmem [thread:$0]  %s245, 1024, %s247, [#allocation9], 64, 64, 4
        $region24: #{tpu_custom_call.1} parent=11 // pred_fallthru
          _
        // Predicated region
        $region25: #{tpu_custom_call.1} parent=11 // pred_check
          %p253 = pneg %p144
        $region26: #{tpu_custom_call.1} parent=11 // pred_check_branch
          %255 = sbr.rel (%p253) target = $region28
        $region27: #{tpu_custom_call.1} parent=11 // pred_region
          _
        $region28: #{tpu_custom_call.1} parent=11 // pred_fallthru
          _
      $region12: #{tpu_custom_call.1} parent=5 // pred_fallthru
        _
      %p256 = scmp.lt.s32.totalorder %s20, 2
      // Predicated region
      $region29: #{tpu_custom_call.1} parent=5 // pred_check
        %p257 = pneg %p256
      $region30: #{tpu_custom_call.1} parent=5 // pred_check_branch
        %259 = sbr.rel (%p257) target = $region32
      $region31: #{tpu_custom_call.1} parent=5 // pred_region
        // Predicated region
        $region33: #{tpu_custom_call.1} parent=31 // pred_check
          %p260 = pneg %p54
        $region34: #{tpu_custom_call.1} parent=31 // pred_check_branch
          %262 = sbr.rel (%p260) target = $region36
        $region35: #{tpu_custom_call.1} parent=31 // pred_region
          %s263 = sand.u32 %s20, 1
          %s264 = scalar_lea.sflag [#allocation3], %s263
          %s265 = sand.u32 %s44, 1
          %s266 = smul.addr %s265, 64
          %s267 = scalar_lea.vmem [#allocation2], %s266
          %s268 = sadd.s32 %s27, %s28
          %s269 = smul.u32 4, %s268
          %271 = vsyncadd %s264, 0
          %s272 = smul.addr %s269, 2
          %s273 = smul.addr %s272, 8
          %s274 = scalar_lea.hbm %s0, %s273
          %s275 = sshll.u32 %s274, 4
          %s276 = int_to_ptr.hbm [resolvable:$true] %s275
          %s277 = sshll.u32 %s267, 4
          %s278 = int_to_ptr.vmem [resolvable:$true] %s277
          %283 = dma.hbm_to_vmem [thread:$0]  %s276, 1024, %s278, %s264, 128, 128, 8
        $region36: #{tpu_custom_call.1} parent=31 // pred_fallthru
          _
        // Predicated region
        $region37: #{tpu_custom_call.1} parent=31 // pred_check
          %p284 = pneg %p164
        $region38: #{tpu_custom_call.1} parent=31 // pred_check_branch
          %286 = sbr.rel (%p284) target = $region40
        $region39: #{tpu_custom_call.1} parent=31 // pred_region
          %s287 = sand.u32 %s20, 1
          %s288 = scalar_lea.sflag [#allocation3], %s287
          %s289 = sand.u32 %s154, 1
          %s290 = smul.addr %s289, 64
          %s291 = scalar_lea.vmem [#allocation10], %s290
          %293 = vsyncadd %s288, 0
          %s294 = smul.addr %s27, 8
          %s295 = smul.addr %s294, 8
          %s296 = scalar_lea.hbm %s5, %s295
          %s297 = sshll.u32 %s296, 4
          %s298 = int_to_ptr.hbm [resolvable:$true] %s297
          %s299 = sshll.u32 %s291, 4
          %s300 = int_to_ptr.vmem [resolvable:$true] %s299
          %305 = dma.hbm_to_vmem [thread:$0]  %s298, 1024, %s300, %s288, 128, 128, 8
        $region40: #{tpu_custom_call.1} parent=31 // pred_fallthru
          _
      $region32: #{tpu_custom_call.1} parent=5 // pred_fallthru
        _
      %p306 = scmp.le.s32.totalorder 1, %s20
      %p307 = scmp.lt.s32.totalorder %s20, 3
      %p308 = pnand %p306, %p307
      %p309 = pneg %p308
      // Predicated region
      $region41: #{tpu_custom_call.1} parent=5 // pred_check
        _
      $region42: #{tpu_custom_call.1} parent=5 // pred_check_branch
        %311 = sbr.rel (%p308) target = $region44
      $region43: #{tpu_custom_call.1} parent=5 // pred_region
        %s312 = ssub.s32 %s20, 1
        %s313 = sand.u32 %s25, 1
        %s314 = scalar_lea.sflag [#allocation3], %s313
        %s315 = sand.u32 %s47, 1
        %s316 = smul.addr %s315, 64
        %s317 = scalar_lea.vmem [#allocation2], %s316
        // Predicated region
        $region45: #{tpu_custom_call.1} parent=43 // pred_check
          %p318 = pneg %p60
        $region46: #{tpu_custom_call.1} parent=43 // pred_check_branch
          %320 = sbr.rel (%p318) target = $region48
        $region47: #{tpu_custom_call.1} parent=43 // pred_region
          %322 = dma.done %s314, 1024
        $region48: #{tpu_custom_call.1} parent=43 // pred_fallthru
          _
        // Predicated region
        $region49: #{tpu_custom_call.1} parent=43 // pred_check
          %p323 = pneg %p81
        $region50: #{tpu_custom_call.1} parent=43 // pred_check_branch
          %325 = sbr.rel (%p323) target = $region52
        $region51: #{tpu_custom_call.1} parent=43 // pred_region
          %327 = dma.done [#allocation6], 3072
        $region52: #{tpu_custom_call.1} parent=43 // pred_fallthru
          _
        // Predicated region
        $region53: #{tpu_custom_call.1} parent=43 // pred_check
          %p328 = pneg %p102
        $region54: #{tpu_custom_call.1} parent=43 // pred_check_branch
          %330 = sbr.rel (%p328) target = $region56
        $region55: #{tpu_custom_call.1} parent=43 // pred_region
          %332 = dma.done [#allocation6], 48
        $region56: #{tpu_custom_call.1} parent=43 // pred_fallthru
          _
        // Predicated region
        $region57: #{tpu_custom_call.1} parent=43 // pred_check
          %p333 = pneg %p123
        $region58: #{tpu_custom_call.1} parent=43 // pred_check_branch
          %335 = sbr.rel (%p333) target = $region60
        $region59: #{tpu_custom_call.1} parent=43 // pred_region
          %337 = dma.done [#allocation9], 1024
        $region60: #{tpu_custom_call.1} parent=43 // pred_fallthru
          _
        %s338 = sand.u32 %s25, 1
        %s339 = scalar_lea.sflag [#allocation3], %s338
        %s340 = sand.u32 %s157, 1
        %s341 = smul.addr %s340, 64
        %s342 = scalar_lea.vmem [#allocation10], %s341
        // Predicated region
        $region61: #{tpu_custom_call.1} parent=43 // pred_check
          %p343 = pneg %p170
        $region62: #{tpu_custom_call.1} parent=43 // pred_check_branch
          %345 = sbr.rel (%p343) target = $region64
        $region63: #{tpu_custom_call.1} parent=43 // pred_region
          %347 = dma.done %s339, 1024
        $region64: #{tpu_custom_call.1} parent=43 // pred_fallthru
          _
        %s348 = sand.u32 %s25, 1
        %s349 = scalar_lea.sflag [#allocation3], %s348
        %s350 = sand.u32 %s47, 1
        %s351 = smul.addr %s350, 64
        %s352 = scalar_lea.vmem [#allocation2], %s351
        %p353 = pneg %p60
        %p354 = pneg %p57
        %p355 = pneg %p81
        %p356 = pneg %p78
        %p357 = pneg %p102
        %p358 = pneg %p99
        %p359 = pneg %p123
        %p360 = pneg %p120
        %p361 = pneg %p144
        %p362 = pneg %p141
        %s363 = sand.u32 %s25, 1
        %s364 = scalar_lea.sflag [#allocation3], %s363
        %s365 = sand.u32 %s157, 1
        %s366 = smul.addr %s365, 64
        %s367 = scalar_lea.vmem [#allocation10], %s366
        %p368 = pneg %p170
        %p369 = pneg %p167
        %p370 = pneg %p198
        %p371 = pneg %p195
        %s372 = sand.u32 %s185, 1
        %s373 = scalar_lea.sflag [#allocation4], %s372
        %s374 = sand.u32 %s185, 1
        %s375 = smul.addr %s374, 64
        %s376 = scalar_lea.vmem [#allocation11], %s375
        %s377 = sadd.s32 %s29, %s30
        %s378 = smul.u32 4, %s377
        %s379 = sadd.s32 %s29, %s30
        %s380 = smul.u32 4, %s379
        %v382 = vld [vmem:[%s317] sm:$0xff]
        %v383 = vld [vmem:[%s317 + $0x8] sm:$0xff]
        %v384 = vld [vmem:[%s317 + $0x10] sm:$0xff]
        %v385 = vld [vmem:[%s317 + $0x18] sm:$0xff]
        %v386 = vld [vmem:[%s317 + $0x20] sm:$0xff]
        %v387 = vld [vmem:[%s317 + $0x28] sm:$0xff]
        %v388 = vld [vmem:[%s317 + $0x30] sm:$0xff]
        %v389 = vld [vmem:[%s317 + $0x38] sm:$0xff]
        %v390 = vpack.c.bf16 %v383, %v382
        %v391 = vpack.c.bf16 %v385, %v384
        %v392 = vpack.c.bf16 %v387, %v386
        %v393 = vpack.c.bf16 %v389, %v388
        %v394 = vld [vmem:[#allocation5] sm:$0xff]
        %v395 = vld [vmem:[#allocation5 + $0x8] sm:$0xf]
        %v396 = vld [vmem:[#allocation5 + $0xc] sm:$0xff]
        %v397 = vld [vmem:[#allocation5 + $0x14] sm:$0xf]
        %v398 = vld [vmem:[#allocation5 + $0x18] sm:$0xff]
        %v399 = vld [vmem:[#allocation5 + $0x20] sm:$0xf]
        %v400 = vld [vmem:[#allocation5 + $0x24] sm:$0xff]
        %v401 = vld [vmem:[#allocation5 + $0x2c] sm:$0xf]
        %v402 = vld [vmem:[#allocation5 + $0x30] sm:$0xff]
        %v403 = vld [vmem:[#allocation5 + $0x38] sm:$0xf]
        %v404 = vld [vmem:[#allocation5 + $0x3c] sm:$0xff]
        %v405 = vld [vmem:[#allocation5 + $0x44] sm:$0xf]
        %v406 = vld [vmem:[#allocation5 + $0x48] sm:$0xff]
        %v407 = vld [vmem:[#allocation5 + $0x50] sm:$0xf]
        %v408 = vld [vmem:[#allocation5 + $0x54] sm:$0xff]
        %v409 = vld [vmem:[#allocation5 + $0x5c] sm:$0xf]
        %v410 = vld [vmem:[#allocation5 + $0x60] sm:$0xff]
        %v411 = vld [vmem:[#allocation5 + $0x68] sm:$0xf]
        %v412 = vld [vmem:[#allocation5 + $0x6c] sm:$0xff]
        %v413 = vld [vmem:[#allocation5 + $0x74] sm:$0xf]
        %v414 = vld [vmem:[#allocation5 + $0x78] sm:$0xff]
        %v415 = vld [vmem:[#allocation5 + $0x80] sm:$0xf]
        %v416 = vld [vmem:[#allocation5 + $0x84] sm:$0xff]
        %v417 = vld [vmem:[#allocation5 + $0x8c] sm:$0xf]
        %v418 = vld [vmem:[#allocation5 + $0x90] sm:$0xff]
        %v419 = vld [vmem:[#allocation5 + $0x98] sm:$0xf]
        %v420 = vld [vmem:[#allocation5 + $0x9c] sm:$0xff]
        %v421 = vld [vmem:[#allocation5 + $0xa4] sm:$0xf]
        %v422 = vld [vmem:[#allocation5 + $0xa8] sm:$0xff]
        %v423 = vld [vmem:[#allocation5 + $0xb0] sm:$0xf]
        %v424 = vld [vmem:[#allocation5 + $0xb4] sm:$0xff]
        %v425 = vld [vmem:[#allocation5 + $0xbc] sm:$0xf]
        %v426 = vld [vmem:[#allocation7] sm:$0x7]
        %v428 = vperm.slane %v426, 0
        %v429 = vperm.slane %v426, 1
        %v430 = vperm.slane %v426, 2
        %v466 = vunpack.c.l.b16 %v394
        %v467 = vunpack.c.h.b16 %v394
        %v468 = vunpack.c.l.b16 %v395
        %v469 = vunpack.c.l.b16 %v396
        %v470 = vunpack.c.h.b16 %v396
        %v471 = vunpack.c.l.b16 %v397
        %v472 = vunpack.c.l.b16 %v398
        %v473 = vunpack.c.h.b16 %v398
        %v474 = vunpack.c.l.b16 %v399
        %v475 = vunpack.c.l.b16 %v400
        %v476 = vunpack.c.h.b16 %v400
        %v477 = vunpack.c.l.b16 %v401
        %v478 = vunpack.c.l.b16 %v402
        %v479 = vunpack.c.h.b16 %v402
        %v480 = vunpack.c.l.b16 %v403
        %v481 = vunpack.c.l.b16 %v404
        %v482 = vunpack.c.h.b16 %v404
        %v483 = vunpack.c.l.b16 %v405
        %v484 = vunpack.c.l.b16 %v406
        %v485 = vunpack.c.h.b16 %v406
        %v486 = vunpack.c.l.b16 %v407
        %v487 = vunpack.c.l.b16 %v408
        %v488 = vunpack.c.h.b16 %v408
        %v489 = vunpack.c.l.b16 %v409
        %v490 = vunpack.c.l.b16 %v410
        %v491 = vunpack.c.h.b16 %v410
        %v492 = vunpack.c.l.b16 %v411
        %v493 = vunpack.c.l.b16 %v412
        %v494 = vunpack.c.h.b16 %v412
        %v495 = vunpack.c.l.b16 %v413
        %v496 = vunpack.c.l.b16 %v414
        %v497 = vunpack.c.h.b16 %v414
        %v498 = vunpack.c.l.b16 %v415
        %v499 = vunpack.c.l.b16 %v416
        %v500 = vunpack.c.h.b16 %v416
        %v501 = vunpack.c.l.b16 %v417
        %v502 = vunpack.c.l.b16 %v418
        %v503 = vunpack.c.h.b16 %v418
        %v504 = vunpack.c.l.b16 %v419
        %v505 = vunpack.c.l.b16 %v420
        %v506 = vunpack.c.h.b16 %v420
        %v507 = vunpack.c.l.b16 %v421
        %v508 = vunpack.c.l.b16 %v422
        %v509 = vunpack.c.h.b16 %v422
        %v510 = vunpack.c.l.b16 %v423
        %v511 = vunpack.c.l.b16 %v424
        %v512 = vunpack.c.h.b16 %v424
        %v513 = vunpack.c.l.b16 %v425
        %v514 = vpack.c.b16 %v469, %v466
        %v515 = vpack.c.b16 %v470, %v467
        %v516 = vpack.c.b16 %v471, %v468
        %v517 = vpack.c.b16 %v475, %v472
        %v518 = vpack.c.b16 %v476, %v473
        %v519 = vpack.c.b16 %v477, %v474
        %v520 = vpack.c.b16 %v481, %v478
        %v521 = vpack.c.b16 %v482, %v479
        %v522 = vpack.c.b16 %v483, %v480
        %v523 = vpack.c.b16 %v487, %v484
        %v524 = vpack.c.b16 %v488, %v485
        %v525 = vpack.c.b16 %v489, %v486
        %v526 = vpack.c.b16 %v493, %v490
        %v527 = vpack.c.b16 %v494, %v491
        %v528 = vpack.c.b16 %v495, %v492
        %v529 = vpack.c.b16 %v499, %v496
        %v530 = vpack.c.b16 %v500, %v497
        %v531 = vpack.c.b16 %v501, %v498
        %v532 = vpack.c.b16 %v505, %v502
        %v533 = vpack.c.b16 %v506, %v503
        %v534 = vpack.c.b16 %v507, %v504
        %v535 = vpack.c.b16 %v511, %v508
        %v536 = vpack.c.b16 %v512, %v509
        %v537 = vpack.c.b16 %v513, %v510
        %562 = vmatpush.bf16.msra.mxu0 %v535
        %563 = vmatpush.bf16.msra.mxu0 %v532
        %564 = vmatpush.bf16.msra.mxu0 %v529
        %565 = vmatpush.bf16.msra.mxu0 %v526
        %566 = vmatpush.bf16.msra.mxu0 %v523
        %567 = vmatpush.bf16.msra.mxu0 %v520
        %568 = vmatpush.bf16.msra.mxu0 %v517
        %569 = vmatpush.bf16.msra.mxu0 %v514
        %570 = vmatmul.bf16.gmra.mxu0 %v390
        %v571 = vpop.f32.mrf.mxu0
        %v572 = vadd.f32 %v428, %v571
        %v573 = vpop.f32.mrf.mxu0
        %v574 = vadd.f32 %v428, %v573
        %575 = vmatmul.bf16.gmra.mxu0 %v391
        %v576 = vpop.f32.mrf.mxu0
        %v577 = vadd.f32 %v428, %v576
        %v578 = vpop.f32.mrf.mxu0
        %v579 = vadd.f32 %v428, %v578
        %580 = vmatmul.bf16.gmra.mxu0 %v392
        %v581 = vpop.f32.mrf.mxu0
        %v582 = vadd.f32 %v428, %v581
        %v583 = vpop.f32.mrf.mxu0
        %v584 = vadd.f32 %v428, %v583
        %585 = vmatmul.bf16.gmra.mxu0 %v393
        %v586 = vpop.f32.mrf.mxu0
        %v587 = vadd.f32 %v428, %v586
        %v588 = vpop.f32.mrf.mxu0
        %v589 = vadd.f32 %v428, %v588
        %590 = vdwg.mxu0
        %591 = vmatpush.bf16.msra.mxu0 %v536
        %592 = vmatpush.bf16.msra.mxu0 %v533
        %593 = vmatpush.bf16.msra.mxu0 %v530
        %594 = vmatpush.bf16.msra.mxu0 %v527
        %595 = vmatpush.bf16.msra.mxu0 %v524
        %596 = vmatpush.bf16.msra.mxu0 %v521
        %597 = vmatpush.bf16.msra.mxu0 %v518
        %598 = vmatpush.bf16.msra.mxu0 %v515
        %599 = vmatmul.bf16.gmra.mxu0 %v390
        %v600 = vpop.f32.mrf.mxu0
        %v601 = vadd.f32 %v429, %v600
        %v602 = vpop.f32.mrf.mxu0
        %v603 = vadd.f32 %v429, %v602
        %604 = vmatmul.bf16.gmra.mxu0 %v391
        %v605 = vpop.f32.mrf.mxu0
        %v606 = vadd.f32 %v429, %v605
        %v607 = vpop.f32.mrf.mxu0
        %v608 = vadd.f32 %v429, %v607
        %609 = vmatmul.bf16.gmra.mxu0 %v392
        %v610 = vpop.f32.mrf.mxu0
        %v611 = vadd.f32 %v429, %v610
        %v612 = vpop.f32.mrf.mxu0
        %v613 = vadd.f32 %v429, %v612
        %614 = vmatmul.bf16.gmra.mxu0 %v393
        %v615 = vpop.f32.mrf.mxu0
        %v616 = vadd.f32 %v429, %v615
        %v617 = vpop.f32.mrf.mxu0
        %v618 = vadd.f32 %v429, %v617
        %619 = vdwg.mxu0
        %620 = vmatpush.bf16.msra.mxu0 %v537
        %621 = vmatpush.bf16.msra.mxu0 %v534
        %622 = vmatpush.bf16.msra.mxu0 %v531
        %623 = vmatpush.bf16.msra.mxu0 %v528
        %624 = vmatpush.bf16.msra.mxu0 %v525
        %625 = vmatpush.bf16.msra.mxu0 %v522
        %626 = vmatpush.bf16.msra.mxu0 %v519
        %627 = vmatpush.bf16.msra.mxu0 %v516
        %628 = vmatmul.bf16.gmra.mxu0 %v390
        %v629 = vpop.f32.mrf.mxu0
        %v630 = vadd.f32 %v430, %v629
        %v631 = vpop.f32.mrf.mxu0
        %v632 = vadd.f32 %v430, %v631
        %633 = vmatmul.bf16.gmra.mxu0 %v391
        %v634 = vpop.f32.mrf.mxu0
        %v635 = vadd.f32 %v430, %v634
        %v636 = vpop.f32.mrf.mxu0
        %v637 = vadd.f32 %v430, %v636
        %638 = vmatmul.bf16.gmra.mxu0 %v392
        %v639 = vpop.f32.mrf.mxu0
        %v640 = vadd.f32 %v430, %v639
        %v641 = vpop.f32.mrf.mxu0
        %v642 = vadd.f32 %v430, %v641
        %643 = vmatmul.bf16.gmra.mxu0 %v393
        %v644 = vpop.f32.mrf.mxu0
        %v645 = vadd.f32 %v430, %v644
        %v646 = vpop.f32.mrf.mxu0
        %v647 = vadd.f32 %v430, %v646
        %648 = vdwg.mxu0
        %v649 = vpack.c.bf16 %v572, %v572
        %v650 = vpack.c.bf16 %v574, %v574
        %v651 = vpack.c.bf16 %v577, %v577
        %v652 = vpack.c.bf16 %v579, %v579
        %v653 = vpack.c.bf16 %v582, %v582
        %v654 = vpack.c.bf16 %v584, %v584
        %v655 = vpack.c.bf16 %v587, %v587
        %v656 = vpack.c.bf16 %v589, %v589
        %v657 = vpack.c.bf16 %v601, %v601
        %v658 = vpack.c.bf16 %v603, %v603
        %v659 = vpack.c.bf16 %v606, %v606
        %v660 = vpack.c.bf16 %v608, %v608
        %v661 = vpack.c.bf16 %v611, %v611
        %v662 = vpack.c.bf16 %v613, %v613
        %v663 = vpack.c.bf16 %v616, %v616
        %v664 = vpack.c.bf16 %v618, %v618
        %v665 = vpack.c.bf16 %v630, %v630
        %v666 = vpack.c.bf16 %v632, %v632
        %v667 = vpack.c.bf16 %v635, %v635
        %v668 = vpack.c.bf16 %v637, %v637
        %v669 = vpack.c.bf16 %v640, %v640
        %v670 = vpack.c.bf16 %v642, %v642
        %v671 = vpack.c.bf16 %v645, %v645
        %v672 = vpack.c.bf16 %v647, %v647
        %v673 = vld [vmem:[%s342] sm:$0xff]
        %v674 = vld [vmem:[%s342 + $0x8] sm:$0xff]
        %v675 = vld [vmem:[%s342 + $0x10] sm:$0xff]
        %v676 = vld [vmem:[%s342 + $0x18] sm:$0xff]
        %v677 = vld [vmem:[%s342 + $0x20] sm:$0xff]
        %v678 = vld [vmem:[%s342 + $0x28] sm:$0xff]
        %v679 = vld [vmem:[%s342 + $0x30] sm:$0xff]
        %v680 = vld [vmem:[%s342 + $0x38] sm:$0xff]
        %v683 = vunpack.c.l.b16 %v649
        %v684 = vunpack.c.l.b16 %v650
        %v685 = vpack.c.b16 %v684, %v683
        %v688 = vunpack.c.l.b16 %v657
        %v689 = vunpack.c.l.b16 %v658
        %v690 = vpack.c.b16 %v689, %v688
        %vm691 = vcmask 261120
        %v693 = vsel %vm691, %v685, 0
        %v696 = vsel %vm691, %v690, 0
        %698 = vmatpush.bf16.xpose.msra.mxu0 0
        %699 = vmatpush.bf16.xpose.msra.mxu0 0
        %700 = vmatpush.bf16.xpose.msra.mxu0 0
        %701 = vmatpush.bf16.xpose.msra.mxu0 0
        %702 = vmatpush.bf16.xpose.msra.mxu0 0
        %703 = vmatpush.bf16.xpose.msra.mxu0 0
        %704 = vmatpush.bf16.xpose.msra.mxu0 0
        %705 = vmatpush.bf16.xpose.msra.mxu0 %v696
        %706 = vmatmul.bf16.gmra.mxu0 %v693
        %v707 = vpop.f32.mrf.mxu0
        %v708 = vadd.f32 0.0, %v707
        %v709 = vpop.f32.mrf.mxu0
        %v710 = vadd.f32 0.0, %v709
        %711 = vdwg.mxu0
        %v714 = vunpack.c.l.b16 %v651
        %v715 = vunpack.c.l.b16 %v652
        %v716 = vpack.c.b16 %v715, %v714
        %v719 = vunpack.c.l.b16 %v659
        %v720 = vunpack.c.l.b16 %v660
        %v721 = vpack.c.b16 %v720, %v719
        %v723 = vsel %vm691, %v716, 0
        %v726 = vsel %vm691, %v721, 0
        %728 = vmatpush.bf16.xpose.msra.mxu0 0
        %729 = vmatpush.bf16.xpose.msra.mxu0 0
        %730 = vmatpush.bf16.xpose.msra.mxu0 0
        %731 = vmatpush.bf16.xpose.msra.mxu0 0
        %732 = vmatpush.bf16.xpose.msra.mxu0 0
        %733 = vmatpush.bf16.xpose.msra.mxu0 0
        %734 = vmatpush.bf16.xpose.msra.mxu0 0
        %735 = vmatpush.bf16.xpose.msra.mxu0 %v726
        %736 = vmatmul.bf16.gmra.mxu0 %v723
        %v737 = vpop.f32.mrf.mxu0
        %v738 = vadd.f32 0.0, %v737
        %v739 = vpop.f32.mrf.mxu0
        %v740 = vadd.f32 0.0, %v739
        %741 = vdwg.mxu0
        %v744 = vunpack.c.l.b16 %v653
        %v745 = vunpack.c.l.b16 %v654
        %v746 = vpack.c.b16 %v745, %v744
        %v749 = vunpack.c.l.b16 %v661
        %v750 = vunpack.c.l.b16 %v662
        %v751 = vpack.c.b16 %v750, %v749
        %v753 = vsel %vm691, %v746, 0
        %v756 = vsel %vm691, %v751, 0
        %758 = vmatpush.bf16.xpose.msra.mxu0 0
        %759 = vmatpush.bf16.xpose.msra.mxu0 0
        %760 = vmatpush.bf16.xpose.msra.mxu0 0
        %761 = vmatpush.bf16.xpose.msra.mxu0 0
        %762 = vmatpush.bf16.xpose.msra.mxu0 0
        %763 = vmatpush.bf16.xpose.msra.mxu0 0
        %764 = vmatpush.bf16.xpose.msra.mxu0 0
        %765 = vmatpush.bf16.xpose.msra.mxu0 %v756
        %766 = vmatmul.bf16.gmra.mxu0 %v753
        %v767 = vpop.f32.mrf.mxu0
        %v768 = vadd.f32 0.0, %v767
        %v769 = vpop.f32.mrf.mxu0
        %v770 = vadd.f32 0.0, %v769
        %771 = vdwg.mxu0
        %v774 = vunpack.c.l.b16 %v655
        %v775 = vunpack.c.l.b16 %v656
        %v776 = vpack.c.b16 %v775, %v774
        %v779 = vunpack.c.l.b16 %v663
        %v780 = vunpack.c.l.b16 %v664
        %v781 = vpack.c.b16 %v780, %v779
        %v783 = vsel %vm691, %v776, 0
        %v786 = vsel %vm691, %v781, 0
        %788 = vmatpush.bf16.xpose.msra.mxu0 0
        %789 = vmatpush.bf16.xpose.msra.mxu0 0
        %790 = vmatpush.bf16.xpose.msra.mxu0 0
        %791 = vmatpush.bf16.xpose.msra.mxu0 0
        %792 = vmatpush.bf16.xpose.msra.mxu0 0
        %793 = vmatpush.bf16.xpose.msra.mxu0 0
        %794 = vmatpush.bf16.xpose.msra.mxu0 0
        %795 = vmatpush.bf16.xpose.msra.mxu0 %v786
        %796 = vmatmul.bf16.gmra.mxu0 %v783
        %v797 = vpop.f32.mrf.mxu0
        %v798 = vadd.f32 0.0, %v797
        %v799 = vpop.f32.mrf.mxu0
        %v800 = vadd.f32 0.0, %v799
        %801 = vdwg.mxu0
        %v802 = vmul.f32 %v708, 0.17677669
        %v803 = vmul.f32 %v710, 0.17677669
        %v804 = vmul.f32 %v738, 0.17677669
        %v805 = vmul.f32 %v740, 0.17677669
        %v806 = vmul.f32 %v768, 0.17677669
        %v807 = vmul.f32 %v770, 0.17677669
        %v808 = vmul.f32 %v798, 0.17677669
        %v809 = vmul.f32 %v800, 0.17677669
        %v810 = vadd.f32 %v802, %v673
        %v811 = vadd.f32 %v803, %v674
        %v812 = vadd.f32 %v804, %v673
        %v813 = vadd.f32 %v805, %v674
        %v814 = vadd.f32 %v806, %v673
        %v815 = vadd.f32 %v807, %v674
        %v816 = vadd.f32 %v808, %v673
        %v817 = vadd.f32 %v809, %v674
        %vm818 = vcmask 130048
        %v819 = vsel %vm818, %v810, -inf
        %820 = vmax.xlane.f32.xlu0 %v819
        %v821 = vpop.xlane.xlu0 %820
        %v822 = vsel %vm818, %v811, -inf
        %823 = vmax.xlane.f32.xlu0 %v822
        %v824 = vpop.xlane.xlu0 %823
        %v825 = vsel %vm818, %v812, -inf
        %826 = vmax.xlane.f32.xlu0 %v825
        %v827 = vpop.xlane.xlu0 %826
        %v828 = vsel %vm818, %v813, -inf
        %829 = vmax.xlane.f32.xlu0 %v828
        %v830 = vpop.xlane.xlu0 %829
        %v831 = vsel %vm818, %v814, -inf
        %832 = vmax.xlane.f32.xlu0 %v831
        %v833 = vpop.xlane.xlu0 %832
        %v834 = vsel %vm818, %v815, -inf
        %835 = vmax.xlane.f32.xlu0 %v834
        %v836 = vpop.xlane.xlu0 %835
        %v837 = vsel %vm818, %v816, -inf
        %838 = vmax.xlane.f32.xlu0 %v837
        %v839 = vpop.xlane.xlu0 %838
        %v840 = vsel %vm818, %v817, -inf
        %841 = vmax.xlane.f32.xlu0 %v840
        %v842 = vpop.xlane.xlu0 %841
        %v843 = vsub.f32 %v810, %v821
        %v844 = vsub.f32 %v811, %v824
        %v845 = vsub.f32 %v812, %v827
        %v846 = vsub.f32 %v813, %v830
        %v847 = vsub.f32 %v814, %v833
        %v848 = vsub.f32 %v815, %v836
        %v849 = vsub.f32 %v816, %v839
        %v850 = vsub.f32 %v817, %v842
        %v851 = vmul.f32 %v843, 1.442695
        %v852 = vpow.pop %v851
        %v853 = vmul.f32 %v844, 1.442695
        %v854 = vpow.pop %v853
        %v855 = vmul.f32 %v845, 1.442695
        %v856 = vpow.pop %v855
        %v857 = vmul.f32 %v846, 1.442695
        %v858 = vpow.pop %v857
        %v859 = vmul.f32 %v847, 1.442695
        %v860 = vpow.pop %v859
        %v861 = vmul.f32 %v848, 1.442695
        %v862 = vpow.pop %v861
        %v863 = vmul.f32 %v849, 1.442695
        %v864 = vpow.pop %v863
        %v865 = vmul.f32 %v850, 1.442695
        %v866 = vpow.pop %v865
        %v867 = vsel %vm818, %v852, 0.0
        %868 = vadd.xlane.f32.xlu0 %v867
        %v869 = vpop.xlane.xlu0 %868
        %v870 = vsel %vm818, %v854, 0.0
        %871 = vadd.xlane.f32.xlu0 %v870
        %v872 = vpop.xlane.xlu0 %871
        %v873 = vsel %vm818, %v856, 0.0
        %874 = vadd.xlane.f32.xlu0 %v873
        %v875 = vpop.xlane.xlu0 %874
        %v876 = vsel %vm818, %v858, 0.0
        %877 = vadd.xlane.f32.xlu0 %v876
        %v878 = vpop.xlane.xlu0 %877
        %v879 = vsel %vm818, %v860, 0.0
        %880 = vadd.xlane.f32.xlu0 %v879
        %v881 = vpop.xlane.xlu0 %880
        %v882 = vsel %vm818, %v862, 0.0
        %883 = vadd.xlane.f32.xlu0 %v882
        %v884 = vpop.xlane.xlu0 %883
        %v885 = vsel %vm818, %v864, 0.0
        %886 = vadd.xlane.f32.xlu0 %v885
        %v887 = vpop.xlane.xlu0 %886
        %v888 = vsel %vm818, %v866, 0.0
        %889 = vadd.xlane.f32.xlu0 %v888
        %v890 = vpop.xlane.xlu0 %889
        %v891 = vrcp.pop %v869
        %v892 = vrcp.pop %v872
        %v893 = vrcp.pop %v875
        %v894 = vrcp.pop %v878
        %v895 = vrcp.pop %v881
        %v896 = vrcp.pop %v884
        %v897 = vrcp.pop %v887
        %v898 = vrcp.pop %v890
        %v899 = vmul.f32 %v852, %v891
        %v900 = vmul.f32 %v854, %v892
        %v901 = vmul.f32 %v856, %v893
        %v902 = vmul.f32 %v858, %v894
        %v903 = vmul.f32 %v860, %v895
        %v904 = vmul.f32 %v862, %v896
        %v905 = vmul.f32 %v864, %v897
        %v906 = vmul.f32 %v866, %v898
        %v907 = vpack.c.bf16 %v899, %v899
        %v908 = vpack.c.bf16 %v900, %v900
        %v909 = vpack.c.bf16 %v901, %v901
        %v910 = vpack.c.bf16 %v902, %v902
        %v911 = vpack.c.bf16 %v903, %v903
        %v912 = vpack.c.bf16 %v904, %v904
        %v913 = vpack.c.bf16 %v905, %v905
        %v914 = vpack.c.bf16 %v906, %v906
        %v917 = vunpack.c.l.b16 %v907
        %v918 = vunpack.c.l.b16 %v908
        %v919 = vpack.c.b16 %v918, %v917
        %v922 = vunpack.c.l.b16 %v665
        %v923 = vunpack.c.l.b16 %v666
        %v924 = vpack.c.b16 %v923, %v922
        %v927 = vsel %vm818, %v919, 0
        %929 = vmatpush.bf16.msra.mxu0 0
        %930 = vmatpush.bf16.msra.mxu0 0
        %931 = vmatpush.bf16.msra.mxu0 0
        %932 = vmatpush.bf16.msra.mxu0 0
        %933 = vmatpush.bf16.msra.mxu0 0
        %934 = vmatpush.bf16.msra.mxu0 0
        %935 = vmatpush.bf16.msra.mxu0 0
        %936 = vmatpush.bf16.msra.mxu0 %v924
        %937 = vmatmul.bf16.gmra.mxu0 %v927
        %v938 = vpop.f32.mrf.mxu0
        %v939 = vadd.f32 0.0, %v938
        %v940 = vpop.f32.mrf.mxu0
        %v941 = vadd.f32 0.0, %v940
        %942 = vdwg.mxu0
        %v945 = vunpack.c.l.b16 %v909
        %v946 = vunpack.c.l.b16 %v910
        %v947 = vpack.c.b16 %v946, %v945
        %v950 = vunpack.c.l.b16 %v667
        %v951 = vunpack.c.l.b16 %v668
        %v952 = vpack.c.b16 %v951, %v950
        %v955 = vsel %vm818, %v947, 0
        %957 = vmatpush.bf16.msra.mxu0 0
        %958 = vmatpush.bf16.msra.mxu0 0
        %959 = vmatpush.bf16.msra.mxu0 0
        %960 = vmatpush.bf16.msra.mxu0 0
        %961 = vmatpush.bf16.msra.mxu0 0
        %962 = vmatpush.bf16.msra.mxu0 0
        %963 = vmatpush.bf16.msra.mxu0 0
        %964 = vmatpush.bf16.msra.mxu0 %v952
        %965 = vmatmul.bf16.gmra.mxu0 %v955
        %v966 = vpop.f32.mrf.mxu0
        %v967 = vadd.f32 0.0, %v966
        %v968 = vpop.f32.mrf.mxu0
        %v969 = vadd.f32 0.0, %v968
        %970 = vdwg.mxu0
        %v973 = vunpack.c.l.b16 %v911
        %v974 = vunpack.c.l.b16 %v912
        %v975 = vpack.c.b16 %v974, %v973
        %v978 = vunpack.c.l.b16 %v669
        %v979 = vunpack.c.l.b16 %v670
        %v980 = vpack.c.b16 %v979, %v978
        %v983 = vsel %vm818, %v975, 0
        %985 = vmatpush.bf16.msra.mxu0 0
        %986 = vmatpush.bf16.msra.mxu0 0
        %987 = vmatpush.bf16.msra.mxu0 0
        %988 = vmatpush.bf16.msra.mxu0 0
        %989 = vmatpush.bf16.msra.mxu0 0
        %990 = vmatpush.bf16.msra.mxu0 0
        %991 = vmatpush.bf16.msra.mxu0 0
        %992 = vmatpush.bf16.msra.mxu0 %v980
        %993 = vmatmul.bf16.gmra.mxu0 %v983
        %v994 = vpop.f32.mrf.mxu0
        %v995 = vadd.f32 0.0, %v994
        %v996 = vpop.f32.mrf.mxu0
        %v997 = vadd.f32 0.0, %v996
        %998 = vdwg.mxu0
        %v1001 = vunpack.c.l.b16 %v913
        %v1002 = vunpack.c.l.b16 %v914
        %v1003 = vpack.c.b16 %v1002, %v1001
        %v1006 = vunpack.c.l.b16 %v671
        %v1007 = vunpack.c.l.b16 %v672
        %v1008 = vpack.c.b16 %v1007, %v1006
        %v1011 = vsel %vm818, %v1003, 0
        %1013 = vmatpush.bf16.msra.mxu0 0
        %1014 = vmatpush.bf16.msra.mxu0 0
        %1015 = vmatpush.bf16.msra.mxu0 0
        %1016 = vmatpush.bf16.msra.mxu0 0
        %1017 = vmatpush.bf16.msra.mxu0 0
        %1018 = vmatpush.bf16.msra.mxu0 0
        %1019 = vmatpush.bf16.msra.mxu0 0
        %1020 = vmatpush.bf16.msra.mxu0 %v1008
        %1021 = vmatmul.bf16.gmra.mxu0 %v1011
        %v1022 = vpop.f32.mrf.mxu0
        %v1023 = vadd.f32 0.0, %v1022
        %v1024 = vpop.f32.mrf.mxu0
        %v1025 = vadd.f32 0.0, %v1024
        %1026 = vdwg.mxu0
        %v1027 = vpack.c.bf16 %v941, %v939
        %v1028 = vpack.c.bf16 %v969, %v967
        %v1029 = vpack.c.bf16 %v997, %v995
        %v1030 = vpack.c.bf16 %v1025, %v1023
        %v1031 = vld [vmem:[#allocation8] sm:$0xf]
        %v1032 = vld [vmem:[#allocation8 + $0x4] sm:$0xf]
        %v1033 = vld [vmem:[#allocation8 + $0x8] sm:$0xf]
        %v1034 = vld [vmem:[#allocation8 + $0xc] sm:$0xf]
        %1035 = vrot.lane.b32.xlu0 %v685, 96
        %v1036 = vpop.permute.xlu0 %1035
        %1037 = vrot.lane.b32.xlu0 %v690, 96
        %v1038 = vpop.permute.xlu0 %1037
        %v1040 = vsel %vm691, %v1036, 0
        %v1043 = vsel %vm691, %v1038, 0
        %1045 = vmatpush.bf16.xpose.msra.mxu0 0
        %1046 = vmatpush.bf16.xpose.msra.mxu0 0
        %1047 = vmatpush.bf16.xpose.msra.mxu0 0
        %1048 = vmatpush.bf16.xpose.msra.mxu0 0
        %1049 = vmatpush.bf16.xpose.msra.mxu0 0
        %1050 = vmatpush.bf16.xpose.msra.mxu0 0
        %1051 = vmatpush.bf16.xpose.msra.mxu0 0
        %1052 = vmatpush.bf16.xpose.msra.mxu0 %v1043
        %1053 = vmatmul.bf16.gmra.mxu0 %v1040
        %v1054 = vpop.f32.mrf.mxu0
        %v1055 = vadd.f32 0.0, %v1054
        %v1056 = vpop.f32.mrf.mxu0
        %v1057 = vadd.f32 0.0, %v1056
        %1058 = vdwg.mxu0
        %1059 = vrot.lane.b32.xlu0 %v716, 96
        %v1060 = vpop.permute.xlu0 %1059
        %1061 = vrot.lane.b32.xlu0 %v721, 96
        %v1062 = vpop.permute.xlu0 %1061
        %v1064 = vsel %vm691, %v1060, 0
        %v1067 = vsel %vm691, %v1062, 0
        %1069 = vmatpush.bf16.xpose.msra.mxu0 0
        %1070 = vmatpush.bf16.xpose.msra.mxu0 0
        %1071 = vmatpush.bf16.xpose.msra.mxu0 0
        %1072 = vmatpush.bf16.xpose.msra.mxu0 0
        %1073 = vmatpush.bf16.xpose.msra.mxu0 0
        %1074 = vmatpush.bf16.xpose.msra.mxu0 0
        %1075 = vmatpush.bf16.xpose.msra.mxu0 0
        %1076 = vmatpush.bf16.xpose.msra.mxu0 %v1067
        %1077 = vmatmul.bf16.gmra.mxu0 %v1064
        %v1078 = vpop.f32.mrf.mxu0
        %v1079 = vadd.f32 0.0, %v1078
        %v1080 = vpop.f32.mrf.mxu0
        %v1081 = vadd.f32 0.0, %v1080
        %1082 = vdwg.mxu0
        %1083 = vrot.lane.b32.xlu0 %v746, 96
        %v1084 = vpop.permute.xlu0 %1083
        %1085 = vrot.lane.b32.xlu0 %v751, 96
        %v1086 = vpop.permute.xlu0 %1085
        %v1088 = vsel %vm691, %v1084, 0
        %v1091 = vsel %vm691, %v1086, 0
        %1093 = vmatpush.bf16.xpose.msra.mxu0 0
        %1094 = vmatpush.bf16.xpose.msra.mxu0 0
        %1095 = vmatpush.bf16.xpose.msra.mxu0 0
        %1096 = vmatpush.bf16.xpose.msra.mxu0 0
        %1097 = vmatpush.bf16.xpose.msra.mxu0 0
        %1098 = vmatpush.bf16.xpose.msra.mxu0 0
        %1099 = vmatpush.bf16.xpose.msra.mxu0 0
        %1100 = vmatpush.bf16.xpose.msra.mxu0 %v1091
        %1101 = vmatmul.bf16.gmra.mxu0 %v1088
        %v1102 = vpop.f32.mrf.mxu0
        %v1103 = vadd.f32 0.0, %v1102
        %v1104 = vpop.f32.mrf.mxu0
        %v1105 = vadd.f32 0.0, %v1104
        %1106 = vdwg.mxu0
        %1107 = vrot.lane.b32.xlu0 %v776, 96
        %v1108 = vpop.permute.xlu0 %1107
        %1109 = vrot.lane.b32.xlu0 %v781, 96
        %v1110 = vpop.permute.xlu0 %1109
        %v1112 = vsel %vm691, %v1108, 0
        %v1115 = vsel %vm691, %v1110, 0
        %1117 = vmatpush.bf16.xpose.msra.mxu0 0
        %1118 = vmatpush.bf16.xpose.msra.mxu0 0
        %1119 = vmatpush.bf16.xpose.msra.mxu0 0
        %1120 = vmatpush.bf16.xpose.msra.mxu0 0
        %1121 = vmatpush.bf16.xpose.msra.mxu0 0
        %1122 = vmatpush.bf16.xpose.msra.mxu0 0
        %1123 = vmatpush.bf16.xpose.msra.mxu0 0
        %1124 = vmatpush.bf16.xpose.msra.mxu0 %v1115
        %1125 = vmatmul.bf16.gmra.mxu0 %v1112
        %v1126 = vpop.f32.mrf.mxu0
        %v1127 = vadd.f32 0.0, %v1126
        %v1128 = vpop.f32.mrf.mxu0
        %v1129 = vadd.f32 0.0, %v1128
        %1130 = vdwg.mxu0
        %v1131 = vmul.f32 %v1055, 0.17677669
        %v1132 = vmul.f32 %v1057, 0.17677669
        %v1133 = vmul.f32 %v1079, 0.17677669
        %v1134 = vmul.f32 %v1081, 0.17677669
        %v1135 = vmul.f32 %v1103, 0.17677669
        %v1136 = vmul.f32 %v1105, 0.17677669
        %v1137 = vmul.f32 %v1127, 0.17677669
        %v1138 = vmul.f32 %v1129, 0.17677669
        %v1139 = vadd.f32 %v1131, %v675
        %v1140 = vadd.f32 %v1132, %v676
        %v1141 = vadd.f32 %v1133, %v675
        %v1142 = vadd.f32 %v1134, %v676
        %v1143 = vadd.f32 %v1135, %v675
        %v1144 = vadd.f32 %v1136, %v676
        %v1145 = vadd.f32 %v1137, %v675
        %v1146 = vadd.f32 %v1138, %v676
        %v1147 = vsel %vm818, %v1139, -inf
        %1148 = vmax.xlane.f32.xlu0 %v1147
        %v1149 = vpop.xlane.xlu0 %1148
        %v1150 = vsel %vm818, %v1140, -inf
        %1151 = vmax.xlane.f32.xlu0 %v1150
        %v1152 = vpop.xlane.xlu0 %1151
        %v1153 = vsel %vm818, %v1141, -inf
        %1154 = vmax.xlane.f32.xlu0 %v1153
        %v1155 = vpop.xlane.xlu0 %1154
        %v1156 = vsel %vm818, %v1142, -inf
        %1157 = vmax.xlane.f32.xlu0 %v1156
        %v1158 = vpop.xlane.xlu0 %1157
        %v1159 = vsel %vm818, %v1143, -inf
        %1160 = vmax.xlane.f32.xlu0 %v1159
        %v1161 = vpop.xlane.xlu0 %1160
        %v1162 = vsel %vm818, %v1144, -inf
        %1163 = vmax.xlane.f32.xlu0 %v1162
        %v1164 = vpop.xlane.xlu0 %1163
        %v1165 = vsel %vm818, %v1145, -inf
        %1166 = vmax.xlane.f32.xlu0 %v1165
        %v1167 = vpop.xlane.xlu0 %1166
        %v1168 = vsel %vm818, %v1146, -inf
        %1169 = vmax.xlane.f32.xlu0 %v1168
        %v1170 = vpop.xlane.xlu0 %1169
        %v1171 = vsub.f32 %v1139, %v1149
        %v1172 = vsub.f32 %v1140, %v1152
        %v1173 = vsub.f32 %v1141, %v1155
        %v1174 = vsub.f32 %v1142, %v1158
        %v1175 = vsub.f32 %v1143, %v1161
        %v1176 = vsub.f32 %v1144, %v1164
        %v1177 = vsub.f32 %v1145, %v1167
        %v1178 = vsub.f32 %v1146, %v1170
        %v1179 = vmul.f32 %v1171, 1.442695
        %v1180 = vpow.pop %v1179
        %v1181 = vmul.f32 %v1172, 1.442695
        %v1182 = vpow.pop %v1181
        %v1183 = vmul.f32 %v1173, 1.442695
        %v1184 = vpow.pop %v1183
        %v1185 = vmul.f32 %v1174, 1.442695
        %v1186 = vpow.pop %v1185
        %v1187 = vmul.f32 %v1175, 1.442695
        %v1188 = vpow.pop %v1187
        %v1189 = vmul.f32 %v1176, 1.442695
        %v1190 = vpow.pop %v1189
        %v1191 = vmul.f32 %v1177, 1.442695
        %v1192 = vpow.pop %v1191
        %v1193 = vmul.f32 %v1178, 1.442695
        %v1194 = vpow.pop %v1193
        %v1195 = vsel %vm818, %v1180, 0.0
        %1196 = vadd.xlane.f32.xlu0 %v1195
        %v1197 = vpop.xlane.xlu0 %1196
        %v1198 = vsel %vm818, %v1182, 0.0
        %1199 = vadd.xlane.f32.xlu0 %v1198
        %v1200 = vpop.xlane.xlu0 %1199
        %v1201 = vsel %vm818, %v1184, 0.0
        %1202 = vadd.xlane.f32.xlu0 %v1201
        %v1203 = vpop.xlane.xlu0 %1202
        %v1204 = vsel %vm818, %v1186, 0.0
        %1205 = vadd.xlane.f32.xlu0 %v1204
        %v1206 = vpop.xlane.xlu0 %1205
        %v1207 = vsel %vm818, %v1188, 0.0
        %1208 = vadd.xlane.f32.xlu0 %v1207
        %v1209 = vpop.xlane.xlu0 %1208
        %v1210 = vsel %vm818, %v1190, 0.0
        %1211 = vadd.xlane.f32.xlu0 %v1210
        %v1212 = vpop.xlane.xlu0 %1211
        %v1213 = vsel %vm818, %v1192, 0.0
        %1214 = vadd.xlane.f32.xlu0 %v1213
        %v1215 = vpop.xlane.xlu0 %1214
        %v1216 = vsel %vm818, %v1194, 0.0
        %1217 = vadd.xlane.f32.xlu0 %v1216
        %v1218 = vpop.xlane.xlu0 %1217
        %v1219 = vrcp.pop %v1197
        %v1220 = vrcp.pop %v1200
        %v1221 = vrcp.pop %v1203
        %v1222 = vrcp.pop %v1206
        %v1223 = vrcp.pop %v1209
        %v1224 = vrcp.pop %v1212
        %v1225 = vrcp.pop %v1215
        %v1226 = vrcp.pop %v1218
        %v1227 = vmul.f32 %v1180, %v1219
        %v1228 = vmul.f32 %v1182, %v1220
        %v1229 = vmul.f32 %v1184, %v1221
        %v1230 = vmul.f32 %v1186, %v1222
        %v1231 = vmul.f32 %v1188, %v1223
        %v1232 = vmul.f32 %v1190, %v1224
        %v1233 = vmul.f32 %v1192, %v1225
        %v1234 = vmul.f32 %v1194, %v1226
        %v1235 = vpack.c.bf16 %v1227, %v1227
        %v1236 = vpack.c.bf16 %v1228, %v1228
        %v1237 = vpack.c.bf16 %v1229, %v1229
        %v1238 = vpack.c.bf16 %v1230, %v1230
        %v1239 = vpack.c.bf16 %v1231, %v1231
        %v1240 = vpack.c.bf16 %v1232, %v1232
        %v1241 = vpack.c.bf16 %v1233, %v1233
        %v1242 = vpack.c.bf16 %v1234, %v1234
        %v1245 = vunpack.c.l.b16 %v1235
        %v1246 = vunpack.c.l.b16 %v1236
        %v1247 = vpack.c.b16 %v1246, %v1245
        %1248 = vrot.lane.b32.xlu0 %v924, 96
        %v1249 = vpop.permute.xlu0 %1248
        %v1252 = vsel %vm818, %v1247, 0
        %1254 = vmatpush.bf16.msra.mxu0 0
        %1255 = vmatpush.bf16.msra.mxu0 0
        %1256 = vmatpush.bf16.msra.mxu0 0
        %1257 = vmatpush.bf16.msra.mxu0 0
        %1258 = vmatpush.bf16.msra.mxu0 0
        %1259 = vmatpush.bf16.msra.mxu0 0
        %1260 = vmatpush.bf16.msra.mxu0 0
        %1261 = vmatpush.bf16.msra.mxu0 %v1249
        %1262 = vmatmul.bf16.gmra.mxu0 %v1252
        %v1263 = vpop.f32.mrf.mxu0
        %v1264 = vadd.f32 0.0, %v1263
        %v1265 = vpop.f32.mrf.mxu0
        %v1266 = vadd.f32 0.0, %v1265
        %1267 = vdwg.mxu0
        %v1270 = vunpack.c.l.b16 %v1237
        %v1271 = vunpack.c.l.b16 %v1238
        %v1272 = vpack.c.b16 %v1271, %v1270
        %1273 = vrot.lane.b32.xlu0 %v952, 96
        %v1274 = vpop.permute.xlu0 %1273
        %v1277 = vsel %vm818, %v1272, 0
        %1279 = vmatpush.bf16.msra.mxu0 0
        %1280 = vmatpush.bf16.msra.mxu0 0
        %1281 = vmatpush.bf16.msra.mxu0 0
        %1282 = vmatpush.bf16.msra.mxu0 0
        %1283 = vmatpush.bf16.msra.mxu0 0
        %1284 = vmatpush.bf16.msra.mxu0 0
        %1285 = vmatpush.bf16.msra.mxu0 0
        %1286 = vmatpush.bf16.msra.mxu0 %v1274
        %1287 = vmatmul.bf16.gmra.mxu0 %v1277
        %v1288 = vpop.f32.mrf.mxu0
        %v1289 = vadd.f32 0.0, %v1288
        %v1290 = vpop.f32.mrf.mxu0
        %v1291 = vadd.f32 0.0, %v1290
        %1292 = vdwg.mxu0
        %v1295 = vunpack.c.l.b16 %v1239
        %v1296 = vunpack.c.l.b16 %v1240
        %v1297 = vpack.c.b16 %v1296, %v1295
        %1298 = vrot.lane.b32.xlu0 %v980, 96
        %v1299 = vpop.permute.xlu0 %1298
        %v1302 = vsel %vm818, %v1297, 0
        %1304 = vmatpush.bf16.msra.mxu0 0
        %1305 = vmatpush.bf16.msra.mxu0 0
        %1306 = vmatpush.bf16.msra.mxu0 0
        %1307 = vmatpush.bf16.msra.mxu0 0
        %1308 = vmatpush.bf16.msra.mxu0 0
        %1309 = vmatpush.bf16.msra.mxu0 0
        %1310 = vmatpush.bf16.msra.mxu0 0
        %1311 = vmatpush.bf16.msra.mxu0 %v1299
        %1312 = vmatmul.bf16.gmra.mxu0 %v1302
        %v1313 = vpop.f32.mrf.mxu0
        %v1314 = vadd.f32 0.0, %v1313
        %v1315 = vpop.f32.mrf.mxu0
        %v1316 = vadd.f32 0.0, %v1315
        %1317 = vdwg.mxu0
        %v1320 = vunpack.c.l.b16 %v1241
        %v1321 = vunpack.c.l.b16 %v1242
        %v1322 = vpack.c.b16 %v1321, %v1320
        %1323 = vrot.lane.b32.xlu0 %v1008, 96
        %v1324 = vpop.permute.xlu0 %1323
        %v1327 = vsel %vm818, %v1322, 0
        %1329 = vmatpush.bf16.msra.mxu0 0
        %1330 = vmatpush.bf16.msra.mxu0 0
        %1331 = vmatpush.bf16.msra.mxu0 0
        %1332 = vmatpush.bf16.msra.mxu0 0
        %1333 = vmatpush.bf16.msra.mxu0 0
        %1334 = vmatpush.bf16.msra.mxu0 0
        %1335 = vmatpush.bf16.msra.mxu0 0
        %1336 = vmatpush.bf16.msra.mxu0 %v1324
        %1337 = vmatmul.bf16.gmra.mxu0 %v1327
        %v1338 = vpop.f32.mrf.mxu0
        %v1339 = vadd.f32 0.0, %v1338
        %v1340 = vpop.f32.mrf.mxu0
        %v1341 = vadd.f32 0.0, %v1340
        %1342 = vdwg.mxu0
        %v1343 = vpack.c.bf16 %v1266, %v1264
        %v1344 = vpack.c.bf16 %v1291, %v1289
        %v1345 = vpack.c.bf16 %v1316, %v1314
        %v1346 = vpack.c.bf16 %v1341, %v1339
        %v1347 = vld [vmem:[#allocation8 + $0x10] sm:$0xf]
        %v1348 = vld [vmem:[#allocation8 + $0x14] sm:$0xf]
        %v1349 = vld [vmem:[#allocation8 + $0x18] sm:$0xf]
        %v1350 = vld [vmem:[#allocation8 + $0x1c] sm:$0xf]
        %v1355 = vunpack.c.l.b16 %v1347
        %v1356 = vunpack.c.l.b16 %v1348
        %v1357 = vunpack.c.l.b16 %v1349
        %v1358 = vunpack.c.l.b16 %v1350
        %v1359 = vpack.c.b16 %v1356, %v1355
        %v1360 = vpack.c.b16 %v1358, %v1357
        %v1364 = vsel %vm691, %v1343, 0
        %v1367 = vsel %vm691, %v1344, 0
        %v1370 = vsel %vm691, %v1345, 0
        %v1373 = vsel %vm691, %v1346, 0
        %1375 = vmatpush.bf16.msra.mxu0 0
        %1376 = vmatpush.bf16.msra.mxu0 0
        %1377 = vmatpush.bf16.msra.mxu0 0
        %1378 = vmatpush.bf16.msra.mxu0 0
        %1379 = vmatpush.bf16.msra.mxu0 0
        %1380 = vmatpush.bf16.msra.mxu0 0
        %1381 = vmatpush.bf16.msra.mxu0 %v1360
        %1382 = vmatpush.bf16.msra.mxu0 %v1359
        %1383 = vmatmul.bf16.gmra.mxu0 %v1364
        %v1384 = vpop.f32.mrf.mxu0
        %v1385 = vadd.f32 0.0, %v1384
        %v1386 = vpop.f32.mrf.mxu0
        %v1387 = vadd.f32 0.0, %v1386
        %1388 = vmatmul.bf16.gmra.mxu0 %v1367
        %v1389 = vpop.f32.mrf.mxu0
        %v1390 = vadd.f32 0.0, %v1389
        %v1391 = vpop.f32.mrf.mxu0
        %v1392 = vadd.f32 0.0, %v1391
        %1393 = vmatmul.bf16.gmra.mxu0 %v1370
        %v1394 = vpop.f32.mrf.mxu0
        %v1395 = vadd.f32 0.0, %v1394
        %v1396 = vpop.f32.mrf.mxu0
        %v1397 = vadd.f32 0.0, %v1396
        %1398 = vmatmul.bf16.gmra.mxu0 %v1373
        %v1399 = vpop.f32.mrf.mxu0
        %v1400 = vadd.f32 0.0, %v1399
        %v1401 = vpop.f32.mrf.mxu0
        %v1402 = vadd.f32 0.0, %v1401
        %1403 = vdwg.mxu0
        %v1408 = vunpack.c.l.b16 %v1031
        %v1409 = vunpack.c.l.b16 %v1032
        %v1410 = vunpack.c.l.b16 %v1033
        %v1411 = vunpack.c.l.b16 %v1034
        %v1412 = vpack.c.b16 %v1409, %v1408
        %v1413 = vpack.c.b16 %v1411, %v1410
        %v1417 = vsel %vm691, %v1027, 0
        %v1420 = vsel %vm691, %v1028, 0
        %v1423 = vsel %vm691, %v1029, 0
        %v1426 = vsel %vm691, %v1030, 0
        %1428 = vmatpush.bf16.msra.mxu0 0
        %1429 = vmatpush.bf16.msra.mxu0 0
        %1430 = vmatpush.bf16.msra.mxu0 0
        %1431 = vmatpush.bf16.msra.mxu0 0
        %1432 = vmatpush.bf16.msra.mxu0 0
        %1433 = vmatpush.bf16.msra.mxu0 0
        %1434 = vmatpush.bf16.msra.mxu0 %v1413
        %1435 = vmatpush.bf16.msra.mxu0 %v1412
        %1436 = vmatmul.bf16.gmra.mxu0 %v1417
        %v1437 = vpop.f32.mrf.mxu0
        %v1438 = vadd.f32 %v1385, %v1437
        %v1439 = vpop.f32.mrf.mxu0
        %v1440 = vadd.f32 %v1387, %v1439
        %1441 = vmatmul.bf16.gmra.mxu0 %v1420
        %v1442 = vpop.f32.mrf.mxu0
        %v1443 = vadd.f32 %v1390, %v1442
        %v1444 = vpop.f32.mrf.mxu0
        %v1445 = vadd.f32 %v1392, %v1444
        %1446 = vmatmul.bf16.gmra.mxu0 %v1423
        %v1447 = vpop.f32.mrf.mxu0
        %v1448 = vadd.f32 %v1395, %v1447
        %v1449 = vpop.f32.mrf.mxu0
        %v1450 = vadd.f32 %v1397, %v1449
        %1451 = vmatmul.bf16.gmra.mxu0 %v1426
        %v1452 = vpop.f32.mrf.mxu0
        %v1453 = vadd.f32 %v1400, %v1452
        %v1454 = vpop.f32.mrf.mxu0
        %v1455 = vadd.f32 %v1402, %v1454
        %1456 = vdwg.mxu0
        %1457 = vrot.lane.b32.xlu0 %v685, 64
        %v1458 = vpop.permute.xlu0 %1457
        %1459 = vrot.lane.b32.xlu0 %v690, 64
        %v1460 = vpop.permute.xlu0 %1459
        %v1462 = vsel %vm691, %v1458, 0
        %v1465 = vsel %vm691, %v1460, 0
        %1467 = vmatpush.bf16.xpose.msra.mxu0 0
        %1468 = vmatpush.bf16.xpose.msra.mxu0 0
        %1469 = vmatpush.bf16.xpose.msra.mxu0 0
        %1470 = vmatpush.bf16.xpose.msra.mxu0 0
        %1471 = vmatpush.bf16.xpose.msra.mxu0 0
        %1472 = vmatpush.bf16.xpose.msra.mxu0 0
        %1473 = vmatpush.bf16.xpose.msra.mxu0 0
        %1474 = vmatpush.bf16.xpose.msra.mxu0 %v1465
        %1475 = vmatmul.bf16.gmra.mxu0 %v1462
        %v1476 = vpop.f32.mrf.mxu0
        %v1477 = vadd.f32 0.0, %v1476
        %v1478 = vpop.f32.mrf.mxu0
        %v1479 = vadd.f32 0.0, %v1478
        %1480 = vdwg.mxu0
        %1481 = vrot.lane.b32.xlu0 %v716, 64
        %v1482 = vpop.permute.xlu0 %1481
        %1483 = vrot.lane.b32.xlu0 %v721, 64
        %v1484 = vpop.permute.xlu0 %1483
        %v1486 = vsel %vm691, %v1482, 0
        %v1489 = vsel %vm691, %v1484, 0
        %1491 = vmatpush.bf16.xpose.msra.mxu0 0
        %1492 = vmatpush.bf16.xpose.msra.mxu0 0
        %1493 = vmatpush.bf16.xpose.msra.mxu0 0
        %1494 = vmatpush.bf16.xpose.msra.mxu0 0
        %1495 = vmatpush.bf16.xpose.msra.mxu0 0
        %1496 = vmatpush.bf16.xpose.msra.mxu0 0
        %1497 = vmatpush.bf16.xpose.msra.mxu0 0
        %1498 = vmatpush.bf16.xpose.msra.mxu0 %v1489
        %1499 = vmatmul.bf16.gmra.mxu0 %v1486
        %v1500 = vpop.f32.mrf.mxu0
        %v1501 = vadd.f32 0.0, %v1500
        %v1502 = vpop.f32.mrf.mxu0
        %v1503 = vadd.f32 0.0, %v1502
        %1504 = vdwg.mxu0
        %1505 = vrot.lane.b32.xlu0 %v746, 64
        %v1506 = vpop.permute.xlu0 %1505
        %1507 = vrot.lane.b32.xlu0 %v751, 64
        %v1508 = vpop.permute.xlu0 %1507
        %v1510 = vsel %vm691, %v1506, 0
        %v1513 = vsel %vm691, %v1508, 0
        %1515 = vmatpush.bf16.xpose.msra.mxu0 0
        %1516 = vmatpush.bf16.xpose.msra.mxu0 0
        %1517 = vmatpush.bf16.xpose.msra.mxu0 0
        %1518 = vmatpush.bf16.xpose.msra.mxu0 0
        %1519 = vmatpush.bf16.xpose.msra.mxu0 0
        %1520 = vmatpush.bf16.xpose.msra.mxu0 0
        %1521 = vmatpush.bf16.xpose.msra.mxu0 0
        %1522 = vmatpush.bf16.xpose.msra.mxu0 %v1513
        %1523 = vmatmul.bf16.gmra.mxu0 %v1510
        %v1524 = vpop.f32.mrf.mxu0
        %v1525 = vadd.f32 0.0, %v1524
        %v1526 = vpop.f32.mrf.mxu0
        %v1527 = vadd.f32 0.0, %v1526
        %1528 = vdwg.mxu0
        %1529 = vrot.lane.b32.xlu0 %v776, 64
        %v1530 = vpop.permute.xlu0 %1529
        %1531 = vrot.lane.b32.xlu0 %v781, 64
        %v1532 = vpop.permute.xlu0 %1531
        %v1534 = vsel %vm691, %v1530, 0
        %v1537 = vsel %vm691, %v1532, 0
        %1539 = vmatpush.bf16.xpose.msra.mxu0 0
        %1540 = vmatpush.bf16.xpose.msra.mxu0 0
        %1541 = vmatpush.bf16.xpose.msra.mxu0 0
        %1542 = vmatpush.bf16.xpose.msra.mxu0 0
        %1543 = vmatpush.bf16.xpose.msra.mxu0 0
        %1544 = vmatpush.bf16.xpose.msra.mxu0 0
        %1545 = vmatpush.bf16.xpose.msra.mxu0 0
        %1546 = vmatpush.bf16.xpose.msra.mxu0 %v1537
        %1547 = vmatmul.bf16.gmra.mxu0 %v1534
        %v1548 = vpop.f32.mrf.mxu0
        %v1549 = vadd.f32 0.0, %v1548
        %v1550 = vpop.f32.mrf.mxu0
        %v1551 = vadd.f32 0.0, %v1550
        %1552 = vdwg.mxu0
        %v1553 = vmul.f32 %v1477, 0.17677669
        %v1554 = vmul.f32 %v1479, 0.17677669
        %v1555 = vmul.f32 %v1501, 0.17677669
        %v1556 = vmul.f32 %v1503, 0.17677669
        %v1557 = vmul.f32 %v1525, 0.17677669
        %v1558 = vmul.f32 %v1527, 0.17677669
        %v1559 = vmul.f32 %v1549, 0.17677669
        %v1560 = vmul.f32 %v1551, 0.17677669
        %v1561 = vadd.f32 %v1553, %v677
        %v1562 = vadd.f32 %v1554, %v678
        %v1563 = vadd.f32 %v1555, %v677
        %v1564 = vadd.f32 %v1556, %v678
        %v1565 = vadd.f32 %v1557, %v677
        %v1566 = vadd.f32 %v1558, %v678
        %v1567 = vadd.f32 %v1559, %v677
        %v1568 = vadd.f32 %v1560, %v678
        %v1569 = vsel %vm818, %v1561, -inf
        %1570 = vmax.xlane.f32.xlu0 %v1569
        %v1571 = vpop.xlane.xlu0 %1570
        %v1572 = vsel %vm818, %v1562, -inf
        %1573 = vmax.xlane.f32.xlu0 %v1572
        %v1574 = vpop.xlane.xlu0 %1573
        %v1575 = vsel %vm818, %v1563, -inf
        %1576 = vmax.xlane.f32.xlu0 %v1575
        %v1577 = vpop.xlane.xlu0 %1576
        %v1578 = vsel %vm818, %v1564, -inf
        %1579 = vmax.xlane.f32.xlu0 %v1578
        %v1580 = vpop.xlane.xlu0 %1579
        %v1581 = vsel %vm818, %v1565, -inf
        %1582 = vmax.xlane.f32.xlu0 %v1581
        %v1583 = vpop.xlane.xlu0 %1582
        %v1584 = vsel %vm818, %v1566, -inf
        %1585 = vmax.xlane.f32.xlu0 %v1584
        %v1586 = vpop.xlane.xlu0 %1585
        %v1587 = vsel %vm818, %v1567, -inf
        %1588 = vmax.xlane.f32.xlu0 %v1587
        %v1589 = vpop.xlane.xlu0 %1588
        %v1590 = vsel %vm818, %v1568, -inf
        %1591 = vmax.xlane.f32.xlu0 %v1590
        %v1592 = vpop.xlane.xlu0 %1591
        %v1593 = vsub.f32 %v1561, %v1571
        %v1594 = vsub.f32 %v1562, %v1574
        %v1595 = vsub.f32 %v1563, %v1577
        %v1596 = vsub.f32 %v1564, %v1580
        %v1597 = vsub.f32 %v1565, %v1583
        %v1598 = vsub.f32 %v1566, %v1586
        %v1599 = vsub.f32 %v1567, %v1589
        %v1600 = vsub.f32 %v1568, %v1592
        %v1601 = vmul.f32 %v1593, 1.442695
        %v1602 = vpow.pop %v1601
        %v1603 = vmul.f32 %v1594, 1.442695
        %v1604 = vpow.pop %v1603
        %v1605 = vmul.f32 %v1595, 1.442695
        %v1606 = vpow.pop %v1605
        %v1607 = vmul.f32 %v1596, 1.442695
        %v1608 = vpow.pop %v1607
        %v1609 = vmul.f32 %v1597, 1.442695
        %v1610 = vpow.pop %v1609
        %v1611 = vmul.f32 %v1598, 1.442695
        %v1612 = vpow.pop %v1611
        %v1613 = vmul.f32 %v1599, 1.442695
        %v1614 = vpow.pop %v1613
        %v1615 = vmul.f32 %v1600, 1.442695
        %v1616 = vpow.pop %v1615
        %v1617 = vsel %vm818, %v1602, 0.0
        %1618 = vadd.xlane.f32.xlu0 %v1617
        %v1619 = vpop.xlane.xlu0 %1618
        %v1620 = vsel %vm818, %v1604, 0.0
        %1621 = vadd.xlane.f32.xlu0 %v1620
        %v1622 = vpop.xlane.xlu0 %1621
        %v1623 = vsel %vm818, %v1606, 0.0
        %1624 = vadd.xlane.f32.xlu0 %v1623
        %v1625 = vpop.xlane.xlu0 %1624
        %v1626 = vsel %vm818, %v1608, 0.0
        %1627 = vadd.xlane.f32.xlu0 %v1626
        %v1628 = vpop.xlane.xlu0 %1627
        %v1629 = vsel %vm818, %v1610, 0.0
        %1630 = vadd.xlane.f32.xlu0 %v1629
        %v1631 = vpop.xlane.xlu0 %1630
        %v1632 = vsel %vm818, %v1612, 0.0
        %1633 = vadd.xlane.f32.xlu0 %v1632
        %v1634 = vpop.xlane.xlu0 %1633
        %v1635 = vsel %vm818, %v1614, 0.0
        %1636 = vadd.xlane.f32.xlu0 %v1635
        %v1637 = vpop.xlane.xlu0 %1636
        %v1638 = vsel %vm818, %v1616, 0.0
        %1639 = vadd.xlane.f32.xlu0 %v1638
        %v1640 = vpop.xlane.xlu0 %1639
        %v1641 = vrcp.pop %v1619
        %v1642 = vrcp.pop %v1622
        %v1643 = vrcp.pop %v1625
        %v1644 = vrcp.pop %v1628
        %v1645 = vrcp.pop %v1631
        %v1646 = vrcp.pop %v1634
        %v1647 = vrcp.pop %v1637
        %v1648 = vrcp.pop %v1640
        %v1649 = vmul.f32 %v1602, %v1641
        %v1650 = vmul.f32 %v1604, %v1642
        %v1651 = vmul.f32 %v1606, %v1643
        %v1652 = vmul.f32 %v1608, %v1644
        %v1653 = vmul.f32 %v1610, %v1645
        %v1654 = vmul.f32 %v1612, %v1646
        %v1655 = vmul.f32 %v1614, %v1647
        %v1656 = vmul.f32 %v1616, %v1648
        %v1657 = vpack.c.bf16 %v1649, %v1649
        %v1658 = vpack.c.bf16 %v1650, %v1650
        %v1659 = vpack.c.bf16 %v1651, %v1651
        %v1660 = vpack.c.bf16 %v1652, %v1652
        %v1661 = vpack.c.bf16 %v1653, %v1653
        %v1662 = vpack.c.bf16 %v1654, %v1654
        %v1663 = vpack.c.bf16 %v1655, %v1655
        %v1664 = vpack.c.bf16 %v1656, %v1656
        %v1667 = vunpack.c.l.b16 %v1657
        %v1668 = vunpack.c.l.b16 %v1658
        %v1669 = vpack.c.b16 %v1668, %v1667
        %1670 = vrot.lane.b32.xlu0 %v924, 64
        %v1671 = vpop.permute.xlu0 %1670
        %v1674 = vsel %vm818, %v1669, 0
        %1676 = vmatpush.bf16.msra.mxu0 0
        %1677 = vmatpush.bf16.msra.mxu0 0
        %1678 = vmatpush.bf16.msra.mxu0 0
        %1679 = vmatpush.bf16.msra.mxu0 0
        %1680 = vmatpush.bf16.msra.mxu0 0
        %1681 = vmatpush.bf16.msra.mxu0 0
        %1682 = vmatpush.bf16.msra.mxu0 0
        %1683 = vmatpush.bf16.msra.mxu0 %v1671
        %1684 = vmatmul.bf16.gmra.mxu0 %v1674
        %v1685 = vpop.f32.mrf.mxu0
        %v1686 = vadd.f32 0.0, %v1685
        %v1687 = vpop.f32.mrf.mxu0
        %v1688 = vadd.f32 0.0, %v1687
        %1689 = vdwg.mxu0
        %v1692 = vunpack.c.l.b16 %v1659
        %v1693 = vunpack.c.l.b16 %v1660
        %v1694 = vpack.c.b16 %v1693, %v1692
        %1695 = vrot.lane.b32.xlu0 %v952, 64
        %v1696 = vpop.permute.xlu0 %1695
        %v1699 = vsel %vm818, %v1694, 0
        %1701 = vmatpush.bf16.msra.mxu0 0
        %1702 = vmatpush.bf16.msra.mxu0 0
        %1703 = vmatpush.bf16.msra.mxu0 0
        %1704 = vmatpush.bf16.msra.mxu0 0
        %1705 = vmatpush.bf16.msra.mxu0 0
        %1706 = vmatpush.bf16.msra.mxu0 0
        %1707 = vmatpush.bf16.msra.mxu0 0
        %1708 = vmatpush.bf16.msra.mxu0 %v1696
        %1709 = vmatmul.bf16.gmra.mxu0 %v1699
        %v1710 = vpop.f32.mrf.mxu0
        %v1711 = vadd.f32 0.0, %v1710
        %v1712 = vpop.f32.mrf.mxu0
        %v1713 = vadd.f32 0.0, %v1712
        %1714 = vdwg.mxu0
        %v1717 = vunpack.c.l.b16 %v1661
        %v1718 = vunpack.c.l.b16 %v1662
        %v1719 = vpack.c.b16 %v1718, %v1717
        %1720 = vrot.lane.b32.xlu0 %v980, 64
        %v1721 = vpop.permute.xlu0 %1720
        %v1724 = vsel %vm818, %v1719, 0
        %1726 = vmatpush.bf16.msra.mxu0 0
        %1727 = vmatpush.bf16.msra.mxu0 0
        %1728 = vmatpush.bf16.msra.mxu0 0
        %1729 = vmatpush.bf16.msra.mxu0 0
        %1730 = vmatpush.bf16.msra.mxu0 0
        %1731 = vmatpush.bf16.msra.mxu0 0
        %1732 = vmatpush.bf16.msra.mxu0 0
        %1733 = vmatpush.bf16.msra.mxu0 %v1721
        %1734 = vmatmul.bf16.gmra.mxu0 %v1724
        %v1735 = vpop.f32.mrf.mxu0
        %v1736 = vadd.f32 0.0, %v1735
        %v1737 = vpop.f32.mrf.mxu0
        %v1738 = vadd.f32 0.0, %v1737
        %1739 = vdwg.mxu0
        %v1742 = vunpack.c.l.b16 %v1663
        %v1743 = vunpack.c.l.b16 %v1664
        %v1744 = vpack.c.b16 %v1743, %v1742
        %1745 = vrot.lane.b32.xlu0 %v1008, 64
        %v1746 = vpop.permute.xlu0 %1745
        %v1749 = vsel %vm818, %v1744, 0
        %1751 = vmatpush.bf16.msra.mxu0 0
        %1752 = vmatpush.bf16.msra.mxu0 0
        %1753 = vmatpush.bf16.msra.mxu0 0
        %1754 = vmatpush.bf16.msra.mxu0 0
        %1755 = vmatpush.bf16.msra.mxu0 0
        %1756 = vmatpush.bf16.msra.mxu0 0
        %1757 = vmatpush.bf16.msra.mxu0 0
        %1758 = vmatpush.bf16.msra.mxu0 %v1746
        %1759 = vmatmul.bf16.gmra.mxu0 %v1749
        %v1760 = vpop.f32.mrf.mxu0
        %v1761 = vadd.f32 0.0, %v1760
        %v1762 = vpop.f32.mrf.mxu0
        %v1763 = vadd.f32 0.0, %v1762
        %1764 = vdwg.mxu0
        %v1765 = vpack.c.bf16 %v1688, %v1686
        %v1766 = vpack.c.bf16 %v1713, %v1711
        %v1767 = vpack.c.bf16 %v1738, %v1736
        %v1768 = vpack.c.bf16 %v1763, %v1761
        %v1769 = vld [vmem:[#allocation8 + $0x20] sm:$0xf]
        %v1770 = vld [vmem:[#allocation8 + $0x24] sm:$0xf]
        %v1771 = vld [vmem:[#allocation8 + $0x28] sm:$0xf]
        %v1772 = vld [vmem:[#allocation8 + $0x2c] sm:$0xf]
        %v1777 = vunpack.c.l.b16 %v1769
        %v1778 = vunpack.c.l.b16 %v1770
        %v1779 = vunpack.c.l.b16 %v1771
        %v1780 = vunpack.c.l.b16 %v1772
        %v1781 = vpack.c.b16 %v1778, %v1777
        %v1782 = vpack.c.b16 %v1780, %v1779
        %v1786 = vsel %vm691, %v1765, 0
        %v1789 = vsel %vm691, %v1766, 0
        %v1792 = vsel %vm691, %v1767, 0
        %v1795 = vsel %vm691, %v1768, 0
        %1797 = vmatpush.bf16.msra.mxu0 0
        %1798 = vmatpush.bf16.msra.mxu0 0
        %1799 = vmatpush.bf16.msra.mxu0 0
        %1800 = vmatpush.bf16.msra.mxu0 0
        %1801 = vmatpush.bf16.msra.mxu0 0
        %1802 = vmatpush.bf16.msra.mxu0 0
        %1803 = vmatpush.bf16.msra.mxu0 %v1782
        %1804 = vmatpush.bf16.msra.mxu0 %v1781
        %1805 = vmatmul.bf16.gmra.mxu0 %v1786
        %v1806 = vpop.f32.mrf.mxu0
        %v1807 = vadd.f32 0.0, %v1806
        %v1808 = vpop.f32.mrf.mxu0
        %v1809 = vadd.f32 0.0, %v1808
        %1810 = vmatmul.bf16.gmra.mxu0 %v1789
        %v1811 = vpop.f32.mrf.mxu0
        %v1812 = vadd.f32 0.0, %v1811
        %v1813 = vpop.f32.mrf.mxu0
        %v1814 = vadd.f32 0.0, %v1813
        %1815 = vmatmul.bf16.gmra.mxu0 %v1792
        %v1816 = vpop.f32.mrf.mxu0
        %v1817 = vadd.f32 0.0, %v1816
        %v1818 = vpop.f32.mrf.mxu0
        %v1819 = vadd.f32 0.0, %v1818
        %1820 = vmatmul.bf16.gmra.mxu0 %v1795
        %v1821 = vpop.f32.mrf.mxu0
        %v1822 = vadd.f32 0.0, %v1821
        %v1823 = vpop.f32.mrf.mxu0
        %v1824 = vadd.f32 0.0, %v1823
        %1825 = vdwg.mxu0
        %v1826 = vadd.f32 %v1438, %v1807
        %v1827 = vadd.f32 %v1440, %v1809
        %v1828 = vadd.f32 %v1443, %v1812
        %v1829 = vadd.f32 %v1445, %v1814
        %v1830 = vadd.f32 %v1448, %v1817
        %v1831 = vadd.f32 %v1450, %v1819
        %v1832 = vadd.f32 %v1453, %v1822
        %v1833 = vadd.f32 %v1455, %v1824
        %1834 = vrot.lane.b32.xlu0 %v685, 32
        %v1835 = vpop.permute.xlu0 %1834
        %1836 = vrot.lane.b32.xlu0 %v690, 32
        %v1837 = vpop.permute.xlu0 %1836
        %v1839 = vsel %vm691, %v1835, 0
        %v1842 = vsel %vm691, %v1837, 0
        %1844 = vmatpush.bf16.xpose.msra.mxu0 0
        %1845 = vmatpush.bf16.xpose.msra.mxu0 0
        %1846 = vmatpush.bf16.xpose.msra.mxu0 0
        %1847 = vmatpush.bf16.xpose.msra.mxu0 0
        %1848 = vmatpush.bf16.xpose.msra.mxu0 0
        %1849 = vmatpush.bf16.xpose.msra.mxu0 0
        %1850 = vmatpush.bf16.xpose.msra.mxu0 0
        %1851 = vmatpush.bf16.xpose.msra.mxu0 %v1842
        %1852 = vmatmul.bf16.gmra.mxu0 %v1839
        %v1853 = vpop.f32.mrf.mxu0
        %v1854 = vadd.f32 0.0, %v1853
        %v1855 = vpop.f32.mrf.mxu0
        %v1856 = vadd.f32 0.0, %v1855
        %1857 = vdwg.mxu0
        %1858 = vrot.lane.b32.xlu0 %v716, 32
        %v1859 = vpop.permute.xlu0 %1858
        %1860 = vrot.lane.b32.xlu0 %v721, 32
        %v1861 = vpop.permute.xlu0 %1860
        %v1863 = vsel %vm691, %v1859, 0
        %v1866 = vsel %vm691, %v1861, 0
        %1868 = vmatpush.bf16.xpose.msra.mxu0 0
        %1869 = vmatpush.bf16.xpose.msra.mxu0 0
        %1870 = vmatpush.bf16.xpose.msra.mxu0 0
        %1871 = vmatpush.bf16.xpose.msra.mxu0 0
        %1872 = vmatpush.bf16.xpose.msra.mxu0 0
        %1873 = vmatpush.bf16.xpose.msra.mxu0 0
        %1874 = vmatpush.bf16.xpose.msra.mxu0 0
        %1875 = vmatpush.bf16.xpose.msra.mxu0 %v1866
        %1876 = vmatmul.bf16.gmra.mxu0 %v1863
        %v1877 = vpop.f32.mrf.mxu0
        %v1878 = vadd.f32 0.0, %v1877
        %v1879 = vpop.f32.mrf.mxu0
        %v1880 = vadd.f32 0.0, %v1879
        %1881 = vdwg.mxu0
        %1882 = vrot.lane.b32.xlu0 %v746, 32
        %v1883 = vpop.permute.xlu0 %1882
        %1884 = vrot.lane.b32.xlu0 %v751, 32
        %v1885 = vpop.permute.xlu0 %1884
        %v1887 = vsel %vm691, %v1883, 0
        %v1890 = vsel %vm691, %v1885, 0
        %1892 = vmatpush.bf16.xpose.msra.mxu0 0
        %1893 = vmatpush.bf16.xpose.msra.mxu0 0
        %1894 = vmatpush.bf16.xpose.msra.mxu0 0
        %1895 = vmatpush.bf16.xpose.msra.mxu0 0
        %1896 = vmatpush.bf16.xpose.msra.mxu0 0
        %1897 = vmatpush.bf16.xpose.msra.mxu0 0
        %1898 = vmatpush.bf16.xpose.msra.mxu0 0
        %1899 = vmatpush.bf16.xpose.msra.mxu0 %v1890
        %1900 = vmatmul.bf16.gmra.mxu0 %v1887
        %v1901 = vpop.f32.mrf.mxu0
        %v1902 = vadd.f32 0.0, %v1901
        %v1903 = vpop.f32.mrf.mxu0
        %v1904 = vadd.f32 0.0, %v1903
        %1905 = vdwg.mxu0
        %1906 = vrot.lane.b32.xlu0 %v776, 32
        %v1907 = vpop.permute.xlu0 %1906
        %1908 = vrot.lane.b32.xlu0 %v781, 32
        %v1909 = vpop.permute.xlu0 %1908
        %v1911 = vsel %vm691, %v1907, 0
        %v1914 = vsel %vm691, %v1909, 0
        %1916 = vmatpush.bf16.xpose.msra.mxu0 0
        %1917 = vmatpush.bf16.xpose.msra.mxu0 0
        %1918 = vmatpush.bf16.xpose.msra.mxu0 0
        %1919 = vmatpush.bf16.xpose.msra.mxu0 0
        %1920 = vmatpush.bf16.xpose.msra.mxu0 0
        %1921 = vmatpush.bf16.xpose.msra.mxu0 0
        %1922 = vmatpush.bf16.xpose.msra.mxu0 0
        %1923 = vmatpush.bf16.xpose.msra.mxu0 %v1914
        %1924 = vmatmul.bf16.gmra.mxu0 %v1911
        %v1925 = vpop.f32.mrf.mxu0
        %v1926 = vadd.f32 0.0, %v1925
        %v1927 = vpop.f32.mrf.mxu0
        %v1928 = vadd.f32 0.0, %v1927
        %1929 = vdwg.mxu0
        %v1930 = vmul.f32 %v1854, 0.17677669
        %v1931 = vmul.f32 %v1856, 0.17677669
        %v1932 = vmul.f32 %v1878, 0.17677669
        %v1933 = vmul.f32 %v1880, 0.17677669
        %v1934 = vmul.f32 %v1902, 0.17677669
        %v1935 = vmul.f32 %v1904, 0.17677669
        %v1936 = vmul.f32 %v1926, 0.17677669
        %v1937 = vmul.f32 %v1928, 0.17677669
        %v1938 = vadd.f32 %v1930, %v679
        %v1939 = vadd.f32 %v1931, %v680
        %v1940 = vadd.f32 %v1932, %v679
        %v1941 = vadd.f32 %v1933, %v680
        %v1942 = vadd.f32 %v1934, %v679
        %v1943 = vadd.f32 %v1935, %v680
        %v1944 = vadd.f32 %v1936, %v679
        %v1945 = vadd.f32 %v1937, %v680
        %v1946 = vsel %vm818, %v1938, -inf
        %1947 = vmax.xlane.f32.xlu0 %v1946
        %v1948 = vpop.xlane.xlu0 %1947
        %v1949 = vsel %vm818, %v1939, -inf
        %1950 = vmax.xlane.f32.xlu0 %v1949
        %v1951 = vpop.xlane.xlu0 %1950
        %v1952 = vsel %vm818, %v1940, -inf
        %1953 = vmax.xlane.f32.xlu0 %v1952
        %v1954 = vpop.xlane.xlu0 %1953
        %v1955 = vsel %vm818, %v1941, -inf
        %1956 = vmax.xlane.f32.xlu0 %v1955
        %v1957 = vpop.xlane.xlu0 %1956
        %v1958 = vsel %vm818, %v1942, -inf
        %1959 = vmax.xlane.f32.xlu0 %v1958
        %v1960 = vpop.xlane.xlu0 %1959
        %v1961 = vsel %vm818, %v1943, -inf
        %1962 = vmax.xlane.f32.xlu0 %v1961
        %v1963 = vpop.xlane.xlu0 %1962
        %v1964 = vsel %vm818, %v1944, -inf
        %1965 = vmax.xlane.f32.xlu0 %v1964
        %v1966 = vpop.xlane.xlu0 %1965
        %v1967 = vsel %vm818, %v1945, -inf
        %1968 = vmax.xlane.f32.xlu0 %v1967
        %v1969 = vpop.xlane.xlu0 %1968
        %v1970 = vsub.f32 %v1938, %v1948
        %v1971 = vsub.f32 %v1939, %v1951
        %v1972 = vsub.f32 %v1940, %v1954
        %v1973 = vsub.f32 %v1941, %v1957
        %v1974 = vsub.f32 %v1942, %v1960
        %v1975 = vsub.f32 %v1943, %v1963
        %v1976 = vsub.f32 %v1944, %v1966
        %v1977 = vsub.f32 %v1945, %v1969
        %v1978 = vmul.f32 %v1970, 1.442695
        %v1979 = vpow.pop %v1978
        %v1980 = vmul.f32 %v1971, 1.442695
        %v1981 = vpow.pop %v1980
        %v1982 = vmul.f32 %v1972, 1.442695
        %v1983 = vpow.pop %v1982
        %v1984 = vmul.f32 %v1973, 1.442695
        %v1985 = vpow.pop %v1984
        %v1986 = vmul.f32 %v1974, 1.442695
        %v1987 = vpow.pop %v1986
        %v1988 = vmul.f32 %v1975, 1.442695
        %v1989 = vpow.pop %v1988
        %v1990 = vmul.f32 %v1976, 1.442695
        %v1991 = vpow.pop %v1990
        %v1992 = vmul.f32 %v1977, 1.442695
        %v1993 = vpow.pop %v1992
        %v1994 = vsel %vm818, %v1979, 0.0
        %1995 = vadd.xlane.f32.xlu0 %v1994
        %v1996 = vpop.xlane.xlu0 %1995
        %v1997 = vsel %vm818, %v1981, 0.0
        %1998 = vadd.xlane.f32.xlu0 %v1997
        %v1999 = vpop.xlane.xlu0 %1998
        %v2000 = vsel %vm818, %v1983, 0.0
        %2001 = vadd.xlane.f32.xlu0 %v2000
        %v2002 = vpop.xlane.xlu0 %2001
        %v2003 = vsel %vm818, %v1985, 0.0
        %2004 = vadd.xlane.f32.xlu0 %v2003
        %v2005 = vpop.xlane.xlu0 %2004
        %v2006 = vsel %vm818, %v1987, 0.0
        %2007 = vadd.xlane.f32.xlu0 %v2006
        %v2008 = vpop.xlane.xlu0 %2007
        %v2009 = vsel %vm818, %v1989, 0.0
        %2010 = vadd.xlane.f32.xlu0 %v2009
        %v2011 = vpop.xlane.xlu0 %2010
        %v2012 = vsel %vm818, %v1991, 0.0
        %2013 = vadd.xlane.f32.xlu0 %v2012
        %v2014 = vpop.xlane.xlu0 %2013
        %v2015 = vsel %vm818, %v1993, 0.0
        %2016 = vadd.xlane.f32.xlu0 %v2015
        %v2017 = vpop.xlane.xlu0 %2016
        %v2018 = vrcp.pop %v1996
        %v2019 = vrcp.pop %v1999
        %v2020 = vrcp.pop %v2002
        %v2021 = vrcp.pop %v2005
        %v2022 = vrcp.pop %v2008
        %v2023 = vrcp.pop %v2011
        %v2024 = vrcp.pop %v2014
        %v2025 = vrcp.pop %v2017
        %v2026 = vmul.f32 %v1979, %v2018
        %v2027 = vmul.f32 %v1981, %v2019
        %v2028 = vmul.f32 %v1983, %v2020
        %v2029 = vmul.f32 %v1985, %v2021
        %v2030 = vmul.f32 %v1987, %v2022
        %v2031 = vmul.f32 %v1989, %v2023
        %v2032 = vmul.f32 %v1991, %v2024
        %v2033 = vmul.f32 %v1993, %v2025
        %v2034 = vpack.c.bf16 %v2026, %v2026
        %v2035 = vpack.c.bf16 %v2027, %v2027
        %v2036 = vpack.c.bf16 %v2028, %v2028
        %v2037 = vpack.c.bf16 %v2029, %v2029
        %v2038 = vpack.c.bf16 %v2030, %v2030
        %v2039 = vpack.c.bf16 %v2031, %v2031
        %v2040 = vpack.c.bf16 %v2032, %v2032
        %v2041 = vpack.c.bf16 %v2033, %v2033
        %v2044 = vunpack.c.l.b16 %v2034
        %v2045 = vunpack.c.l.b16 %v2035
        %v2046 = vpack.c.b16 %v2045, %v2044
        %2047 = vrot.lane.b32.xlu0 %v924, 32
        %v2048 = vpop.permute.xlu0 %2047
        %v2051 = vsel %vm818, %v2046, 0
        %2053 = vmatpush.bf16.msra.mxu0 0
        %2054 = vmatpush.bf16.msra.mxu0 0
        %2055 = vmatpush.bf16.msra.mxu0 0
        %2056 = vmatpush.bf16.msra.mxu0 0
        %2057 = vmatpush.bf16.msra.mxu0 0
        %2058 = vmatpush.bf16.msra.mxu0 0
        %2059 = vmatpush.bf16.msra.mxu0 0
        %2060 = vmatpush.bf16.msra.mxu0 %v2048
        %2061 = vmatmul.bf16.gmra.mxu0 %v2051
        %v2062 = vpop.f32.mrf.mxu0
        %v2063 = vadd.f32 0.0, %v2062
        %v2064 = vpop.f32.mrf.mxu0
        %v2065 = vadd.f32 0.0, %v2064
        %2066 = vdwg.mxu0
        %v2069 = vunpack.c.l.b16 %v2036
        %v2070 = vunpack.c.l.b16 %v2037
        %v2071 = vpack.c.b16 %v2070, %v2069
        %2072 = vrot.lane.b32.xlu0 %v952, 32
        %v2073 = vpop.permute.xlu0 %2072
        %v2076 = vsel %vm818, %v2071, 0
        %2078 = vmatpush.bf16.msra.mxu0 0
        %2079 = vmatpush.bf16.msra.mxu0 0
        %2080 = vmatpush.bf16.msra.mxu0 0
        %2081 = vmatpush.bf16.msra.mxu0 0
        %2082 = vmatpush.bf16.msra.mxu0 0
        %2083 = vmatpush.bf16.msra.mxu0 0
        %2084 = vmatpush.bf16.msra.mxu0 0
        %2085 = vmatpush.bf16.msra.mxu0 %v2073
        %2086 = vmatmul.bf16.gmra.mxu0 %v2076
        %v2087 = vpop.f32.mrf.mxu0
        %v2088 = vadd.f32 0.0, %v2087
        %v2089 = vpop.f32.mrf.mxu0
        %v2090 = vadd.f32 0.0, %v2089
        %2091 = vdwg.mxu0
        %v2094 = vunpack.c.l.b16 %v2038
        %v2095 = vunpack.c.l.b16 %v2039
        %v2096 = vpack.c.b16 %v2095, %v2094
        %2097 = vrot.lane.b32.xlu0 %v980, 32
        %v2098 = vpop.permute.xlu0 %2097
        %v2101 = vsel %vm818, %v2096, 0
        %2103 = vmatpush.bf16.msra.mxu0 0
        %2104 = vmatpush.bf16.msra.mxu0 0
        %2105 = vmatpush.bf16.msra.mxu0 0
        %2106 = vmatpush.bf16.msra.mxu0 0
        %2107 = vmatpush.bf16.msra.mxu0 0
        %2108 = vmatpush.bf16.msra.mxu0 0
        %2109 = vmatpush.bf16.msra.mxu0 0
        %2110 = vmatpush.bf16.msra.mxu0 %v2098
        %2111 = vmatmul.bf16.gmra.mxu0 %v2101
        %v2112 = vpop.f32.mrf.mxu0
        %v2113 = vadd.f32 0.0, %v2112
        %v2114 = vpop.f32.mrf.mxu0
        %v2115 = vadd.f32 0.0, %v2114
        %2116 = vdwg.mxu0
        %v2119 = vunpack.c.l.b16 %v2040
        %v2120 = vunpack.c.l.b16 %v2041
        %v2121 = vpack.c.b16 %v2120, %v2119
        %2122 = vrot.lane.b32.xlu0 %v1008, 32
        %v2123 = vpop.permute.xlu0 %2122
        %v2126 = vsel %vm818, %v2121, 0
        %2128 = vmatpush.bf16.msra.mxu0 0
        %2129 = vmatpush.bf16.msra.mxu0 0
        %2130 = vmatpush.bf16.msra.mxu0 0
        %2131 = vmatpush.bf16.msra.mxu0 0
        %2132 = vmatpush.bf16.msra.mxu0 0
        %2133 = vmatpush.bf16.msra.mxu0 0
        %2134 = vmatpush.bf16.msra.mxu0 0
        %2135 = vmatpush.bf16.msra.mxu0 %v2123
        %2136 = vmatmul.bf16.gmra.mxu0 %v2126
        %v2137 = vpop.f32.mrf.mxu0
        %v2138 = vadd.f32 0.0, %v2137
        %v2139 = vpop.f32.mrf.mxu0
        %v2140 = vadd.f32 0.0, %v2139
        %2141 = vdwg.mxu0
        %v2142 = vpack.c.bf16 %v2065, %v2063
        %v2143 = vpack.c.bf16 %v2090, %v2088
        %v2144 = vpack.c.bf16 %v2115, %v2113
        %v2145 = vpack.c.bf16 %v2140, %v2138
        %v2146 = vld [vmem:[#allocation8 + $0x30] sm:$0xf]
        %v2147 = vld [vmem:[#allocation8 + $0x34] sm:$0xf]
        %v2148 = vld [vmem:[#allocation8 + $0x38] sm:$0xf]
        %v2149 = vld [vmem:[#allocation8 + $0x3c] sm:$0xf]
        %v2154 = vunpack.c.l.b16 %v2146
        %v2155 = vunpack.c.l.b16 %v2147
        %v2156 = vunpack.c.l.b16 %v2148
        %v2157 = vunpack.c.l.b16 %v2149
        %v2158 = vpack.c.b16 %v2155, %v2154
        %v2159 = vpack.c.b16 %v2157, %v2156
        %v2163 = vsel %vm691, %v2142, 0
        %v2166 = vsel %vm691, %v2143, 0
        %v2169 = vsel %vm691, %v2144, 0
        %v2172 = vsel %vm691, %v2145, 0
        %2174 = vmatpush.bf16.msra.mxu0 0
        %2175 = vmatpush.bf16.msra.mxu0 0
        %2176 = vmatpush.bf16.msra.mxu0 0
        %2177 = vmatpush.bf16.msra.mxu0 0
        %2178 = vmatpush.bf16.msra.mxu0 0
        %2179 = vmatpush.bf16.msra.mxu0 0
        %2180 = vmatpush.bf16.msra.mxu0 %v2159
        %2181 = vmatpush.bf16.msra.mxu0 %v2158
        %2182 = vmatmul.bf16.gmra.mxu0 %v2163
        %v2183 = vpop.f32.mrf.mxu0
        %v2184 = vadd.f32 0.0, %v2183
        %v2185 = vpop.f32.mrf.mxu0
        %v2186 = vadd.f32 0.0, %v2185
        %2187 = vmatmul.bf16.gmra.mxu0 %v2166
        %v2188 = vpop.f32.mrf.mxu0
        %v2189 = vadd.f32 0.0, %v2188
        %v2190 = vpop.f32.mrf.mxu0
        %v2191 = vadd.f32 0.0, %v2190
        %2192 = vmatmul.bf16.gmra.mxu0 %v2169
        %v2193 = vpop.f32.mrf.mxu0
        %v2194 = vadd.f32 0.0, %v2193
        %v2195 = vpop.f32.mrf.mxu0
        %v2196 = vadd.f32 0.0, %v2195
        %2197 = vmatmul.bf16.gmra.mxu0 %v2172
        %v2198 = vpop.f32.mrf.mxu0
        %v2199 = vadd.f32 0.0, %v2198
        %v2200 = vpop.f32.mrf.mxu0
        %v2201 = vadd.f32 0.0, %v2200
        %2202 = vdwg.mxu0
        %v2203 = vadd.f32 %v1826, %v2184
        %v2204 = vadd.f32 %v1827, %v2186
        %v2205 = vadd.f32 %v1828, %v2189
        %v2206 = vadd.f32 %v1829, %v2191
        %v2207 = vadd.f32 %v1830, %v2194
        %v2208 = vadd.f32 %v1831, %v2196
        %v2209 = vadd.f32 %v1832, %v2199
        %v2210 = vadd.f32 %v1833, %v2201
        %v2211 = vld [vmem:[%s4] sm:$0x1]
        %v2213 = vperm.slane %v2211, 0
        %v2215 = vadd.f32 %v2203, %v2213
        %v2216 = vadd.f32 %v2204, %v2213
        %v2217 = vadd.f32 %v2205, %v2213
        %v2218 = vadd.f32 %v2206, %v2213
        %v2219 = vadd.f32 %v2207, %v2213
        %v2220 = vadd.f32 %v2208, %v2213
        %v2221 = vadd.f32 %v2209, %v2213
        %v2222 = vadd.f32 %v2210, %v2213
        %2223 = vst [vmem:[%s376] sm:$0xff] %v2215
        %2224 = vst [vmem:[%s376 + $0x8] sm:$0xff] %v2216
        %2225 = vst [vmem:[%s376 + $0x10] sm:$0xff] %v2217
        %2226 = vst [vmem:[%s376 + $0x18] sm:$0xff] %v2218
        %2227 = vst [vmem:[%s376 + $0x20] sm:$0xff] %v2219
        %2228 = vst [vmem:[%s376 + $0x28] sm:$0xff] %v2220
        %2229 = vst [vmem:[%s376 + $0x30] sm:$0xff] %v2221
        %2230 = vst [vmem:[%s376 + $0x38] sm:$0xff] %v2222
        %s2231 = sand.u32 %s185, 1
        %s2232 = scalar_lea.sflag [#allocation4], %s2231
        %s2233 = sand.u32 %s185, 1
        %s2234 = smul.addr %s2233, 64
        %s2235 = scalar_lea.vmem [#allocation11], %s2234
        // Predicated region
        $region65: #{tpu_custom_call.1} parent=43 // pred_check
          %p2236 = pneg %p195
        $region66: #{tpu_custom_call.1} parent=43 // pred_check_branch
          %2238 = sbr.rel (%p2236) target = $region68
        $region67: #{tpu_custom_call.1} parent=43 // pred_region
          %s2239 = sadd.s32 %s29, %s30
          %s2240 = smul.u32 4, %s2239
          %2242 = vsyncadd %s2232, 0
          %s2243 = smul.addr %s2240, 2
          %s2244 = smul.addr %s2243, 8
          %s2245 = scalar_lea.hbm %s6, %s2244
          %s2246 = sshll.u32 %s2235, 4
          %s2247 = int_to_ptr.vmem [resolvable:$true] %s2246
          %s2248 = sshll.u32 %s2245, 4
          %s2249 = int_to_ptr.hbm [resolvable:$true] %s2248
          %2254 = dma.vmem_to_hbm [thread:$0]  %s2247, 1024, %s2249, %s2232, 128, 128, 8
        $region68: #{tpu_custom_call.1} parent=43 // pred_fallthru
          _
      $region44: #{tpu_custom_call.1} parent=5 // pred_fallthru
        _
      %p2255 = scmp.le.s32.totalorder 2, %s20
      // Predicated region
      $region69: #{tpu_custom_call.1} parent=5 // pred_check
        %p2256 = pneg %p2255
      $region70: #{tpu_custom_call.1} parent=5 // pred_check_branch
        %2258 = sbr.rel (%p2256) target = $region72
      $region71: #{tpu_custom_call.1} parent=5 // pred_region
        %s2259 = ssub.s32 %s20, 2
        // Predicated region
        $region73: #{tpu_custom_call.1} parent=71 // pred_check
          %p2260 = pneg %p201
        $region74: #{tpu_custom_call.1} parent=71 // pred_check_branch
          %2262 = sbr.rel (%p2260) target = $region76
        $region75: #{tpu_custom_call.1} parent=71 // pred_region
          %s2263 = sand.u32 %s186, 1
          %s2264 = scalar_lea.sflag [#allocation4], %s2263
          %s2265 = sand.u32 %s186, 1
          %s2266 = smul.addr %s2265, 64
          %s2267 = scalar_lea.vmem [#allocation11], %s2266
          %2269 = dma.done %s2264, 1024
        $region76: #{tpu_custom_call.1} parent=71 // pred_fallthru
          _
      $region72: #{tpu_custom_call.1} parent=5 // pred_fallthru
        _
    $region6: #{tpu_custom_call.1} parent=1 // loop_footer
      %s24 = sadd.s32 1, %s20
    $region7: #{tpu_custom_call.1} parent=1 // loop_footer_branch
      %19 = sbr.rel target = $region3
    $region8: #{tpu_custom_call.1} parent=1 // loop_exit
      _
    %2270 = vsyncpa [#allocation3], 1
    %s2271 = scalar_lea.sflag [#allocation3], 1
    %2272 = vsyncpa %s2271, 1
    %2273 = vsyncpa [#allocation6], 1
    %2274 = vsyncpa [#allocation9], 1
    %2275 = vsyncpa [#allocation4], 1
    %s2276 = scalar_lea.sflag [#allocation4], 1
    %2277 = vsyncpa %s2276, 1

</llo_original>
